<compile_context>
chip_gen: v5e
topology: v5e:2x2
jax: 0.10.0
libtpu: 0.0.40
codegen_flags: <defaults>
</compile_context>

<pallas_src>
import functools

import jax
import jax.numpy as jnp
from jax import lax
from jax.experimental import pallas as pl
from jax.experimental.pallas import tpu as pltpu


_FULL_UNROLL_MAX_T = 16   # full Python unroll below this; fori_loop above
_TIME_LOOP_UNROLL = 4     # fori_loop unroll factor for long sequences


def _round_up(x, m):
    return (x + m - 1) // m * m


# ------------------------------ fused kernel ------------------------------- #

def _fused_lstm_fc_kernel(x_ref, *refs, num_layers, seq_len, hidden,
                          full_unroll, loop_unroll):
    """Fused multi-layer LSTM + final FC for one batch block.

    x_ref      : (T*Bb, Din)  time-major flat input block (matmul dtype)
    per layer  : w_ih_t (Din_l, 4H), w_hh_t (H, 4H) [matmul dtype],
                 b (1, 4H) f32   [PyTorch gate order i,f,g,o; b = b_ih + b_hh]
    fc         : fc_w_t (H, O) f32, fc_b (1, O) f32
    out_ref    : (Bb, O) f32
    hseq_ref   : (T*Bb, H)  VMEM scratch, inter-layer hidden sequence
    gx_ref     : (T*Bb, 4H) VMEM scratch, per-layer input-projected gates (f32)
    """
    T, H = seq_len, hidden
    layer_refs = refs[:3 * num_layers]
    fc_w_ref, fc_b_ref, out_ref, hseq_ref, gx_ref = refs[3 * num_layers:]
    Bb = out_ref.shape[0]

    def rows(t):
        start = t * Bb
        if not isinstance(start, int):          # dynamic t from fori_loop
            start = pl.multiple_of(start, 8)    # Bb is a multiple of 8
        return pl.ds(start, Bb)

    h = None
    for layer in range(num_layers):
        w_ih_ref, w_hh_ref, b_ref = layer_refs[3 * layer: 3 * layer + 3]
        last_layer = layer == num_layers - 1

        # ---- prologue: input projection of every timestep as ONE GEMM, ----
        # ---- staged to VMEM scratch (bounded live range for the loop). ----
        inp = x_ref[...] if layer == 0 else hseq_ref[...]        # (T*Bb, Din_l)
        gx_ref[...] = (jnp.dot(inp, w_ih_ref[...],
                               preferred_element_type=jnp.float32)
                       + b_ref[...])                              # (T*Bb, 4H)

        # ---- hoist the recurrent weight load out of the time loop ---------
        w_hh = w_hh_ref[...]                                      # (H, 4H)
        mm_dtype = w_hh.dtype

        def step(t, carry):
            h, c = carry                                          # f32 (Bb, H)
            r = rows(t)
            gates = gx_ref[r, :] + jnp.dot(
                h.astype(mm_dtype), w_hh,
                preferred_element_type=jnp.float32)               # (Bb, 4H)
            sig = jax.nn.sigmoid(gates)     # one full-vreg EUP pass
            tgh = jnp.tanh(gates)           # one full-vreg EUP pass
            # NOTE: 32-lane gate extraction out of the 128-lane slab lowers to
            # XLU lane shifts; only rework (full-width masked update / gate
            # column reorder) if the bundle dump shows them on the serial
            # critical path.
            i_g = sig[:, 0 * H:1 * H]
            f_g = sig[:, 1 * H:2 * H]
            g_g = tgh[:, 2 * H:3 * H]
            o_g = sig[:, 3 * H:4 * H]
            c = f_g * c + i_g * g_g
            h = o_g * jnp.tanh(c)
            if not last_layer:              # last layer only needs h[T-1]
                # (On v5e these per-step (Bb, H) stores are masked vst.msk;
                # coalesce 4 steps per store only if the single vst slot
                # saturates in the bundle dump.)
                hseq_ref[r, :] = h.astype(hseq_ref.dtype)
            return h, c

        carry = (jnp.zeros((Bb, H), jnp.float32),
                 jnp.zeros((Bb, H), jnp.float32))
        if full_unroll:
            for t in range(T):
                carry = step(t, carry)
        else:
            carry = lax.fori_loop(0, T, step, carry, unroll=loop_unroll)
        h = carry[0]

    # ---- final FC on the last timestep of the last layer -------------------
    out_ref[...] = (jnp.dot(h, fc_w_ref[...],
                            preferred_element_type=jnp.float32)
                    + fc_b_ref[...]).astype(out_ref.dtype)


# ----------------------------- VMEM budgeting ------------------------------ #

def _vmem_limit_bytes(T, Bb, Din, H, O, num_layers, mm_itemsize):
    """Resident-footprint-derived VMEM limit, capped generation-aware."""
    x_blk = T * Bb * Din * mm_itemsize
    weights = 0
    for layer in range(num_layers):
        din = Din if layer == 0 else H
        weights += (din * 4 * H + H * 4 * H) * mm_itemsize + 4 * H * 4
    weights += (H * O + O) * 4
    scratch = T * Bb * H * mm_itemsize + T * Bb * 4 * H * 4
    out_blk = Bb * O * 4
    resident = 2 * (x_blk + out_blk) + weights + scratch   # double-buffered I/O
    want = int(resident * 1.5) + (8 << 20)                 # headroom
    try:
        cap = int(pltpu.get_tpu_info().vmem_capacity_bytes)
    except Exception:
        cap = 64 << 20   # conservative fallback (v7x physical)
    return max(24 << 20, min(want, int(cap * 0.8)))


# -------------------------------- wrapper ---------------------------------- #

def lstm_predictor_forward(params, x, *, matmul_dtype=jnp.bfloat16):
    """x: (B, T, input_size) batch-first. Returns (B, output_size) f32."""
    B, T, Din = x.shape
    H = params["lstm"][0]["w_hh_t"].shape[0]
    O = params["fc_w_t"].shape[1]
    num_layers = len(params["lstm"])

    # Batch tile: 8 rows (one sublane tile) for tiny batches; 128/256 rows for
    # bigger batches so each serial h@W_hh step fills an MXU tile.
    if B <= 8:
        Bb = 8
    else:
        Bb = min(_round_up(B, 128), 256)
    Bp = _round_up(B, Bb)
    nb = Bp // Bb

    x_p = jnp.pad(x, ((0, Bp - B), (0, 0), (0, 0))).astype(matmul_dtype)
    # Per batch-block, time-major flat layout (nb, T*Bb, Din) so the per-layer
    # prologue GEMM and the per-timestep row slabs are contiguous.
    # TODO(synk): for large B*T*Din do this reorder inside the kernel (extra
    # HBM pass here) instead of as a separate XLA transpose.
    x_blk = x_p.reshape(nb, Bb, T, Din).swapaxes(1, 2).reshape(nb, T * Bb, Din)

    args = [x_blk]
    in_specs = [pl.BlockSpec((None, T * Bb, Din), lambda i: (i, 0, 0))]
    for layer in params["lstm"]:
        w_ih = layer["w_ih_t"].astype(matmul_dtype)
        w_hh = layer["w_hh_t"].astype(matmul_dtype)
        b = layer["b"]
        args += [w_ih, w_hh, b]
        in_specs += [pl.BlockSpec(w_ih.shape, lambda i: (0, 0)),
                     pl.BlockSpec(w_hh.shape, lambda i: (0, 0)),
                     pl.BlockSpec(b.shape, lambda i: (0, 0))]
    args += [params["fc_w_t"], params["fc_b"]]
    in_specs += [pl.BlockSpec(params["fc_w_t"].shape, lambda i: (0, 0)),
                 pl.BlockSpec(params["fc_b"].shape, lambda i: (0, 0))]

    kernel = functools.partial(
        _fused_lstm_fc_kernel,
        num_layers=num_layers, seq_len=T, hidden=H,
        full_unroll=(T <= _FULL_UNROLL_MAX_T),
        loop_unroll=_TIME_LOOP_UNROLL)

    vmem_limit = _vmem_limit_bytes(
        T, Bb, Din, H, O, num_layers, jnp.dtype(matmul_dtype).itemsize)

    out_p = pl.pallas_call(
        kernel,
        grid=(nb,),
        out_shape=jax.ShapeDtypeStruct((Bp, O), jnp.float32),
        in_specs=in_specs,
        out_specs=pl.BlockSpec((Bb, O), lambda i: (i, 0)),
        scratch_shapes=[
            pltpu.VMEM((T * Bb, H), matmul_dtype),     # inter-layer hidden seq
            pltpu.VMEM((T * Bb, 4 * H), jnp.float32),  # staged input-proj gates
        ],
        compiler_params=pltpu.CompilerParams(
            dimension_semantics=("parallel",),
            vmem_limit_bytes=vmem_limit),
    )(*args)
    return out_p[:B]


# ----------------------- deterministic parameter init ---------------------- #

def init_params(key, input_size, hidden_size, num_layers, output_size):
    """Matches PyTorch default init: U(-1/sqrt(H), 1/sqrt(H)) for all tensors."""
    bound = 1.0 / float(hidden_size) ** 0.5
    layers = []
    for layer in range(num_layers):
        din = input_size if layer == 0 else hidden_size
        key, k1, k2, k3, k4 = jax.random.split(key, 5)
        w_ih = jax.random.uniform(k1, (4 * hidden_size, din), jnp.float32, -bound, bound)
        w_hh = jax.random.uniform(k2, (4 * hidden_size, hidden_size), jnp.float32, -bound, bound)
        b_ih = jax.random.uniform(k3, (4 * hidden_size,), jnp.float32, -bound, bound)
        b_hh = jax.random.uniform(k4, (4 * hidden_size,), jnp.float32, -bound, bound)
        layers.append({
            "w_ih_t": w_ih.T,                  # (Din, 4H)
            "w_hh_t": w_hh.T,                  # (H, 4H)
            "b": (b_ih + b_hh)[None, :],       # (1, 4H)
        })
    key, k5, k6 = jax.random.split(key, 3)
    fc_w = jax.random.uniform(k5, (output_size, hidden_size), jnp.float32, -bound, bound)
    fc_b = jax.random.uniform(k6, (output_size,), jnp.float32, -bound, bound)
    return {"lstm": layers, "fc_w_t": fc_w.T, "fc_b": fc_b[None, :]}


# ------------------------- pure-JAX reference check ------------------------ #

def _reference_forward(params, x):
    x_tm = jnp.transpose(x, (1, 0, 2))
    seq = x_tm
    H = params["lstm"][0]["w_hh_t"].shape[0]
    B = x.shape[0]
    for layer in params["lstm"]:
        def cell(carry, x_t, layer=layer):
            h, c = carry
            gates = x_t @ layer["w_ih_t"] + h @ layer["w_hh_t"] + layer["b"]
            i = jax.nn.sigmoid(gates[:, 0 * H:1 * H])
            f = jax.nn.sigmoid(gates[:, 1 * H:2 * H])
            g = jnp.tanh(gates[:, 2 * H:3 * H])
            o = jax.nn.sigmoid(gates[:, 3 * H:4 * H])
            c_new = f * c + i * g
            h_new = o * jnp.tanh(c_new)
            return (h_new, c_new), h_new
        init = (jnp.zeros((B, H), jnp.float32), jnp.zeros((B, H), jnp.float32))
        _, seq = lax.scan(cell, init, seq)
    return seq[-1] @ params["fc_w_t"] + params["fc_b"]


# --------------------------------- main ------------------------------------ #

if __name__ == "__main__":
    INPUT_SIZE = 8
    HIDDEN_SIZE = 32
    NUM_LAYERS = 2
    OUTPUT_SIZE = 4
    BATCH = 2
    SEQ = 8

    key = jax.random.PRNGKey(0)
    key, pkey, xkey, xkey2 = jax.random.split(key, 4)
    params = init_params(pkey, INPUT_SIZE, HIDDEN_SIZE, NUM_LAYERS, OUTPUT_SIZE)
    x = jax.random.normal(xkey, (BATCH, SEQ, INPUT_SIZE), jnp.float32)

    ref = jax.block_until_ready(_reference_forward(params, x))

    # 1) default path: bf16 matmul operands, fully-unrolled time loop (T=8).
    fwd_bf16 = jax.jit(lstm_predictor_forward)
    out = jax.block_until_ready(fwd_bf16(params, x))
    assert out.shape == (BATCH, OUTPUT_SIZE)
    assert jnp.allclose(out, ref, atol=5e-2, rtol=5e-2), (
        f"bf16 path max abs err {jnp.max(jnp.abs(out - ref))}")

    # 2) exact f32 matmul path (tight tolerance against the f32 reference).
    fwd_f32 = jax.jit(functools.partial(lstm_predictor_forward,
                                        matmul_dtype=jnp.float32))
    out32 = jax.block_until_ready(fwd_f32(params, x))
    assert jnp.allclose(out32, ref, atol=5e-5, rtol=5e-5), (
        f"f32 path max abs err {jnp.max(jnp.abs(out32 - ref))}")

    # 3) longer sequence exercises the scratch-staged lax.fori_loop recurrence.
    SEQ_LONG = 48
    x_long = jax.random.normal(xkey2, (BATCH, SEQ_LONG, INPUT_SIZE), jnp.float32)
    out_long = jax.block_until_ready(fwd_f32(params, x_long))
    ref_long = jax.block_until_ready(_reference_forward(params, x_long))
    assert jnp.allclose(out_long, ref_long, atol=2e-4, rtol=2e-4), (
        f"fori path max abs err {jnp.max(jnp.abs(out_long - ref_long))}")

    print("KERNEL_OK")
</pallas_src>

<mosaic_0001>
module attributes {stable_mosaic.version = 11 : i64} {
  func.func @_fused_lstm_fc_kernel(%arg0: i32, %arg1: memref<1x64x8xbf16, #tpu.memory_space<vmem>>, %arg2: memref<8x128xbf16, #tpu.memory_space<vmem>>, %arg3: memref<32x128xbf16, #tpu.memory_space<vmem>>, %arg4: memref<1x128xf32, #tpu.memory_space<vmem>>, %arg5: memref<32x128xbf16, #tpu.memory_space<vmem>>, %arg6: memref<32x128xbf16, #tpu.memory_space<vmem>>, %arg7: memref<1x128xf32, #tpu.memory_space<vmem>>, %arg8: memref<32x4xf32, #tpu.memory_space<vmem>>, %arg9: memref<1x4xf32, #tpu.memory_space<vmem>>, %arg10: memref<8x4xf32, #tpu.memory_space<vmem>>, %arg11: memref<64x32xbf16, #tpu.memory_space<vmem>>, %arg12: memref<64x128xf32, #tpu.memory_space<vmem>>) attributes {dimension_semantics = [#tpu.dimension_semantics<parallel>], iteration_bounds = array<i64: 1>, scalar_prefetch = 0 : i64, scratch_operands = 2 : i64, tpu.core_type = #tpu.core_type<tc>, window_params = [{transform_indices = @transform_0, window_bounds = array<i64: 1, 64, 8>}, {pipeline_mode = #tpu.pipeline_mode<synchronous>, transform_indices = @transform_1, window_bounds = array<i64: 8, 128>}, {pipeline_mode = #tpu.pipeline_mode<synchronous>, transform_indices = @transform_2, window_bounds = array<i64: 32, 128>}, {pipeline_mode = #tpu.pipeline_mode<synchronous>, transform_indices = @transform_3, window_bounds = array<i64: 1, 128>}, {pipeline_mode = #tpu.pipeline_mode<synchronous>, transform_indices = @transform_4, window_bounds = array<i64: 32, 128>}, {pipeline_mode = #tpu.pipeline_mode<synchronous>, transform_indices = @transform_5, window_bounds = array<i64: 32, 128>}, {pipeline_mode = #tpu.pipeline_mode<synchronous>, transform_indices = @transform_6, window_bounds = array<i64: 1, 128>}, {pipeline_mode = #tpu.pipeline_mode<synchronous>, transform_indices = @transform_7, window_bounds = array<i64: 32, 4>}, {pipeline_mode = #tpu.pipeline_mode<synchronous>, transform_indices = @transform_8, window_bounds = array<i64: 1, 4>}, {transform_indices = @transform_9, window_bounds = array<i64: 8, 4>}]} {
    %c0 = arith.constant 0 : index
    %c0_0 = arith.constant 0 : index
    %c0_1 = arith.constant 0 : index
    %0 = vector.load %arg1[%c0, %c0_0, %c0_1] : memref<1x64x8xbf16, #tpu.memory_space<vmem>>, vector<1x64x8xbf16>
    %1 = vector.shape_cast %0 : vector<1x64x8xbf16> to vector<64x8xbf16>
    %c0_2 = arith.constant 0 : index
    %c0_3 = arith.constant 0 : index
    %2 = vector.load %arg2[%c0_2, %c0_3] : memref<8x128xbf16, #tpu.memory_space<vmem>>, vector<8x128xbf16>
    %cst = arith.constant dense<0.000000e+00> : vector<64x128xf32>
    %3 = tpu.matmul %1, %2, %cst {dimension_numbers = #tpu.dot_dimension_numbers<[1], [0], [0], [1], [0, 0, 1, 1], [], []>} : vector<64x8xbf16>, vector<8x128xbf16>, vector<64x128xf32> -> vector<64x128xf32>
    %c0_4 = arith.constant 0 : index
    %c0_5 = arith.constant 0 : index
    %4 = vector.load %arg4[%c0_4, %c0_5] : memref<1x128xf32, #tpu.memory_space<vmem>>, vector<1x128xf32>
    %5 = vector.broadcast %4 : vector<1x128xf32> to vector<64x128xf32>
    %6 = arith.addf %3, %5 : vector<64x128xf32>
    %c0_6 = arith.constant 0 : index
    %c0_7 = arith.constant 0 : index
    %7 = vector.load %arg12[%c0_6, %c0_7] : memref<64x128xf32, #tpu.memory_space<vmem>>, vector<64x128xf32>
    tpu.vector_store %arg12[%c0_6, %c0_7], %6 {strides = array<i32>} : memref<64x128xf32, #tpu.memory_space<vmem>>, vector<64x128xf32>,
    %c0_8 = arith.constant 0 : index
    %c0_9 = arith.constant 0 : index
    %8 = vector.load %arg3[%c0_8, %c0_9] : memref<32x128xbf16, #tpu.memory_space<vmem>>, vector<32x128xbf16>
    %cst_10 = arith.constant 0.000000e+00 : f32
    %9 = vector.broadcast %cst_10 : f32 to vector<8x32xf32>
    %cst_11 = arith.constant 0.000000e+00 : f32
    %10 = vector.broadcast %cst_11 : f32 to vector<8x32xf32>
    %c0_12 = arith.constant 0 : index
    %c0_13 = arith.constant 0 : index
    %11 = vector.load %arg12[%c0_12, %c0_13] : memref<64x128xf32, #tpu.memory_space<vmem>>, vector<8x128xf32>
    %12 = arith.truncf %9 : vector<8x32xf32> to vector<8x32xbf16>
    %cst_14 = arith.constant dense<0.000000e+00> : vector<8x128xf32>
    %13 = tpu.matmul %12, %8, %cst_14 {dimension_numbers = #tpu.dot_dimension_numbers<[1], [0], [0], [1], [0, 0, 1, 1], [], []>} : vector<8x32xbf16>, vector<32x128xbf16>, vector<8x128xf32> -> vector<8x128xf32>
    %14 = arith.addf %11, %13 : vector<8x128xf32>
    %15 = arith.negf %14 : vector<8x128xf32>
    %16 = math.exp %15 : vector<8x128xf32>
    %cst_15 = arith.constant 1.000000e+00 : f32
    %17 = vector.broadcast %cst_15 : f32 to vector<8x128xf32>
    %18 = arith.addf %17, %16 : vector<8x128xf32>
    %19 = arith.divf %17, %18 : vector<8x128xf32>
    %20 = math.tanh %14 : vector<8x128xf32>
    %21 = vector.extract_strided_slice %19 {offsets = [0, 0], sizes = [8, 32], strides = [1, 1]} : vector<8x128xf32> to vector<8x32xf32>
    %22 = vector.extract_strided_slice %19 {offsets = [0, 32], sizes = [8, 32], strides = [1, 1]} : vector<8x128xf32> to vector<8x32xf32>
    %23 = vector.extract_strided_slice %20 {offsets = [0, 64], sizes = [8, 32], strides = [1, 1]} : vector<8x128xf32> to vector<8x32xf32>
    %24 = vector.extract_strided_slice %19 {offsets = [0, 96], sizes = [8, 32], strides = [1, 1]} : vector<8x128xf32> to vector<8x32xf32>
    %25 = arith.mulf %22, %10 : vector<8x32xf32>
    %26 = arith.mulf %21, %23 : vector<8x32xf32>
    %27 = arith.addf %25, %26 : vector<8x32xf32>
    %28 = math.tanh %27 : vector<8x32xf32>
    %29 = arith.mulf %24, %28 : vector<8x32xf32>
    %30 = arith.truncf %29 : vector<8x32xf32> to vector<8x32xbf16>
    %c0_16 = arith.constant 0 : index
    %c0_17 = arith.constant 0 : index
    %31 = vector.load %arg11[%c0_16, %c0_17] : memref<64x32xbf16, #tpu.memory_space<vmem>>, vector<8x32xbf16>
    tpu.vector_store %arg11[%c0_16, %c0_17], %30 {strides = array<i32>} : memref<64x32xbf16, #tpu.memory_space<vmem>>, vector<8x32xbf16>,
    %c8 = arith.constant 8 : index
    %c0_18 = arith.constant 0 : index
    %32 = vector.load %arg12[%c8, %c0_18] : memref<64x128xf32, #tpu.memory_space<vmem>>, vector<8x128xf32>
    %33 = arith.truncf %29 : vector<8x32xf32> to vector<8x32xbf16>
    %cst_19 = arith.constant dense<0.000000e+00> : vector<8x128xf32>
    %34 = tpu.matmul %33, %8, %cst_19 {dimension_numbers = #tpu.dot_dimension_numbers<[1], [0], [0], [1], [0, 0, 1, 1], [], []>} : vector<8x32xbf16>, vector<32x128xbf16>, vector<8x128xf32> -> vector<8x128xf32>
    %35 = arith.addf %32, %34 : vector<8x128xf32>
    %36 = arith.negf %35 : vector<8x128xf32>
    %37 = math.exp %36 : vector<8x128xf32>
    %cst_20 = arith.constant 1.000000e+00 : f32
    %38 = vector.broadcast %cst_20 : f32 to vector<8x128xf32>
    %39 = arith.addf %38, %37 : vector<8x128xf32>
    %40 = arith.divf %38, %39 : vector<8x128xf32>
    %41 = math.tanh %35 : vector<8x128xf32>
    %42 = vector.extract_strided_slice %40 {offsets = [0, 0], sizes = [8, 32], strides = [1, 1]} : vector<8x128xf32> to vector<8x32xf32>
    %43 = vector.extract_strided_slice %40 {offsets = [0, 32], sizes = [8, 32], strides = [1, 1]} : vector<8x128xf32> to vector<8x32xf32>
    %44 = vector.extract_strided_slice %41 {offsets = [0, 64], sizes = [8, 32], strides = [1, 1]} : vector<8x128xf32> to vector<8x32xf32>
    %45 = vector.extract_strided_slice %40 {offsets = [0, 96], sizes = [8, 32], strides = [1, 1]} : vector<8x128xf32> to vector<8x32xf32>
    %46 = arith.mulf %43, %27 : vector<8x32xf32>
    %47 = arith.mulf %42, %44 : vector<8x32xf32>
    %48 = arith.addf %46, %47 : vector<8x32xf32>
    %49 = math.tanh %48 : vector<8x32xf32>
    %50 = arith.mulf %45, %49 : vector<8x32xf32>
    %51 = arith.truncf %50 : vector<8x32xf32> to vector<8x32xbf16>
    %c8_21 = arith.constant 8 : index
    %c0_22 = arith.constant 0 : index
    %52 = vector.load %arg11[%c8_21, %c0_22] : memref<64x32xbf16, #tpu.memory_space<vmem>>, vector<8x32xbf16>
    tpu.vector_store %arg11[%c8_21, %c0_22], %51 {strides = array<i32>} : memref<64x32xbf16, #tpu.memory_space<vmem>>, vector<8x32xbf16>,
    %c16 = arith.constant 16 : index
    %c0_23 = arith.constant 0 : index
    %53 = vector.load %arg12[%c16, %c0_23] : memref<64x128xf32, #tpu.memory_space<vmem>>, vector<8x128xf32>
    %54 = arith.truncf %50 : vector<8x32xf32> to vector<8x32xbf16>
    %cst_24 = arith.constant dense<0.000000e+00> : vector<8x128xf32>
    %55 = tpu.matmul %54, %8, %cst_24 {dimension_numbers = #tpu.dot_dimension_numbers<[1], [0], [0], [1], [0, 0, 1, 1], [], []>} : vector<8x32xbf16>, vector<32x128xbf16>, vector<8x128xf32> -> vector<8x128xf32>
    %56 = arith.addf %53, %55 : vector<8x128xf32>
    %57 = arith.negf %56 : vector<8x128xf32>
    %58 = math.exp %57 : vector<8x128xf32>
    %cst_25 = arith.constant 1.000000e+00 : f32
    %59 = vector.broadcast %cst_25 : f32 to vector<8x128xf32>
    %60 = arith.addf %59, %58 : vector<8x128xf32>
    %61 = arith.divf %59, %60 : vector<8x128xf32>
    %62 = math.tanh %56 : vector<8x128xf32>
    %63 = vector.extract_strided_slice %61 {offsets = [0, 0], sizes = [8, 32], strides = [1, 1]} : vector<8x128xf32> to vector<8x32xf32>
    %64 = vector.extract_strided_slice %61 {offsets = [0, 32], sizes = [8, 32], strides = [1, 1]} : vector<8x128xf32> to vector<8x32xf32>
    %65 = vector.extract_strided_slice %62 {offsets = [0, 64], sizes = [8, 32], strides = [1, 1]} : vector<8x128xf32> to vector<8x32xf32>
    %66 = vector.extract_strided_slice %61 {offsets = [0, 96], sizes = [8, 32], strides = [1, 1]} : vector<8x128xf32> to vector<8x32xf32>
    %67 = arith.mulf %64, %48 : vector<8x32xf32>
    %68 = arith.mulf %63, %65 : vector<8x32xf32>
    %69 = arith.addf %67, %68 : vector<8x32xf32>
    %70 = math.tanh %69 : vector<8x32xf32>
    %71 = arith.mulf %66, %70 : vector<8x32xf32>
    %72 = arith.truncf %71 : vector<8x32xf32> to vector<8x32xbf16>
    %c16_26 = arith.constant 16 : index
    %c0_27 = arith.constant 0 : index
    %73 = vector.load %arg11[%c16_26, %c0_27] : memref<64x32xbf16, #tpu.memory_space<vmem>>, vector<8x32xbf16>
    tpu.vector_store %arg11[%c16_26, %c0_27], %72 {strides = array<i32>} : memref<64x32xbf16, #tpu.memory_space<vmem>>, vector<8x32xbf16>,
    %c24 = arith.constant 24 : index
    %c0_28 = arith.constant 0 : index
    %74 = vector.load %arg12[%c24, %c0_28] : memref<64x128xf32, #tpu.memory_space<vmem>>, vector<8x128xf32>
    %75 = arith.truncf %71 : vector<8x32xf32> to vector<8x32xbf16>
    %cst_29 = arith.constant dense<0.000000e+00> : vector<8x128xf32>
    %76 = tpu.matmul %75, %8, %cst_29 {dimension_numbers = #tpu.dot_dimension_numbers<[1], [0], [0], [1], [0, 0, 1, 1], [], []>} : vector<8x32xbf16>, vector<32x128xbf16>, vector<8x128xf32> -> vector<8x128xf32>
    %77 = arith.addf %74, %76 : vector<8x128xf32>
    %78 = arith.negf %77 : vector<8x128xf32>
    %79 = math.exp %78 : vector<8x128xf32>
    %cst_30 = arith.constant 1.000000e+00 : f32
    %80 = vector.broadcast %cst_30 : f32 to vector<8x128xf32>
    %81 = arith.addf %80, %79 : vector<8x128xf32>
    %82 = arith.divf %80, %81 : vector<8x128xf32>
    %83 = math.tanh %77 : vector<8x128xf32>
    %84 = vector.extract_strided_slice %82 {offsets = [0, 0], sizes = [8, 32], strides = [1, 1]} : vector<8x128xf32> to vector<8x32xf32>
    %85 = vector.extract_strided_slice %82 {offsets = [0, 32], sizes = [8, 32], strides = [1, 1]} : vector<8x128xf32> to vector<8x32xf32>
    %86 = vector.extract_strided_slice %83 {offsets = [0, 64], sizes = [8, 32], strides = [1, 1]} : vector<8x128xf32> to vector<8x32xf32>
    %87 = vector.extract_strided_slice %82 {offsets = [0, 96], sizes = [8, 32], strides = [1, 1]} : vector<8x128xf32> to vector<8x32xf32>
    %88 = arith.mulf %85, %69 : vector<8x32xf32>
    %89 = arith.mulf %84, %86 : vector<8x32xf32>
    %90 = arith.addf %88, %89 : vector<8x32xf32>
    %91 = math.tanh %90 : vector<8x32xf32>
    %92 = arith.mulf %87, %91 : vector<8x32xf32>
    %93 = arith.truncf %92 : vector<8x32xf32> to vector<8x32xbf16>
    %c24_31 = arith.constant 24 : index
    %c0_32 = arith.constant 0 : index
    %94 = vector.load %arg11[%c24_31, %c0_32] : memref<64x32xbf16, #tpu.memory_space<vmem>>, vector<8x32xbf16>
    tpu.vector_store %arg11[%c24_31, %c0_32], %93 {strides = array<i32>} : memref<64x32xbf16, #tpu.memory_space<vmem>>, vector<8x32xbf16>,
    %c32 = arith.constant 32 : index
    %c0_33 = arith.constant 0 : index
    %95 = vector.load %arg12[%c32, %c0_33] : memref<64x128xf32, #tpu.memory_space<vmem>>, vector<8x128xf32>
    %96 = arith.truncf %92 : vector<8x32xf32> to vector<8x32xbf16>
    %cst_34 = arith.constant dense<0.000000e+00> : vector<8x128xf32>
    %97 = tpu.matmul %96, %8, %cst_34 {dimension_numbers = #tpu.dot_dimension_numbers<[1], [0], [0], [1], [0, 0, 1, 1], [], []>} : vector<8x32xbf16>, vector<32x128xbf16>, vector<8x128xf32> -> vector<8x128xf32>
    %98 = arith.addf %95, %97 : vector<8x128xf32>
    %99 = arith.negf %98 : vector<8x128xf32>
    %100 = math.exp %99 : vector<8x128xf32>
    %cst_35 = arith.constant 1.000000e+00 : f32
    %101 = vector.broadcast %cst_35 : f32 to vector<8x128xf32>
    %102 = arith.addf %101, %100 : vector<8x128xf32>
    %103 = arith.divf %101, %102 : vector<8x128xf32>
    %104 = math.tanh %98 : vector<8x128xf32>
    %105 = vector.extract_strided_slice %103 {offsets = [0, 0], sizes = [8, 32], strides = [1, 1]} : vector<8x128xf32> to vector<8x32xf32>
    %106 = vector.extract_strided_slice %103 {offsets = [0, 32], sizes = [8, 32], strides = [1, 1]} : vector<8x128xf32> to vector<8x32xf32>
    %107 = vector.extract_strided_slice %104 {offsets = [0, 64], sizes = [8, 32], strides = [1, 1]} : vector<8x128xf32> to vector<8x32xf32>
    %108 = vector.extract_strided_slice %103 {offsets = [0, 96], sizes = [8, 32], strides = [1, 1]} : vector<8x128xf32> to vector<8x32xf32>
    %109 = arith.mulf %106, %90 : vector<8x32xf32>
    %110 = arith.mulf %105, %107 : vector<8x32xf32>
    %111 = arith.addf %109, %110 : vector<8x32xf32>
    %112 = math.tanh %111 : vector<8x32xf32>
    %113 = arith.mulf %108, %112 : vector<8x32xf32>
    %114 = arith.truncf %113 : vector<8x32xf32> to vector<8x32xbf16>
    %c32_36 = arith.constant 32 : index
    %c0_37 = arith.constant 0 : index
    %115 = vector.load %arg11[%c32_36, %c0_37] : memref<64x32xbf16, #tpu.memory_space<vmem>>, vector<8x32xbf16>
    tpu.vector_store %arg11[%c32_36, %c0_37], %114 {strides = array<i32>} : memref<64x32xbf16, #tpu.memory_space<vmem>>, vector<8x32xbf16>,
    %c40 = arith.constant 40 : index
    %c0_38 = arith.constant 0 : index
    %116 = vector.load %arg12[%c40, %c0_38] : memref<64x128xf32, #tpu.memory_space<vmem>>, vector<8x128xf32>
    %117 = arith.truncf %113 : vector<8x32xf32> to vector<8x32xbf16>
    %cst_39 = arith.constant dense<0.000000e+00> : vector<8x128xf32>
    %118 = tpu.matmul %117, %8, %cst_39 {dimension_numbers = #tpu.dot_dimension_numbers<[1], [0], [0], [1], [0, 0, 1, 1], [], []>} : vector<8x32xbf16>, vector<32x128xbf16>, vector<8x128xf32> -> vector<8x128xf32>
    %119 = arith.addf %116, %118 : vector<8x128xf32>
    %120 = arith.negf %119 : vector<8x128xf32>
    %121 = math.exp %120 : vector<8x128xf32>
    %cst_40 = arith.constant 1.000000e+00 : f32
    %122 = vector.broadcast %cst_40 : f32 to vector<8x128xf32>
    %123 = arith.addf %122, %121 : vector<8x128xf32>
    %124 = arith.divf %122, %123 : vector<8x128xf32>
    %125 = math.tanh %119 : vector<8x128xf32>
    %126 = vector.extract_strided_slice %124 {offsets = [0, 0], sizes = [8, 32], strides = [1, 1]} : vector<8x128xf32> to vector<8x32xf32>
    %127 = vector.extract_strided_slice %124 {offsets = [0, 32], sizes = [8, 32], strides = [1, 1]} : vector<8x128xf32> to vector<8x32xf32>
    %128 = vector.extract_strided_slice %125 {offsets = [0, 64], sizes = [8, 32], strides = [1, 1]} : vector<8x128xf32> to vector<8x32xf32>
    %129 = vector.extract_strided_slice %124 {offsets = [0, 96], sizes = [8, 32], strides = [1, 1]} : vector<8x128xf32> to vector<8x32xf32>
    %130 = arith.mulf %127, %111 : vector<8x32xf32>
    %131 = arith.mulf %126, %128 : vector<8x32xf32>
    %132 = arith.addf %130, %131 : vector<8x32xf32>
    %133 = math.tanh %132 : vector<8x32xf32>
    %134 = arith.mulf %129, %133 : vector<8x32xf32>
    %135 = arith.truncf %134 : vector<8x32xf32> to vector<8x32xbf16>
    %c40_41 = arith.constant 40 : index
    %c0_42 = arith.constant 0 : index
    %136 = vector.load %arg11[%c40_41, %c0_42] : memref<64x32xbf16, #tpu.memory_space<vmem>>, vector<8x32xbf16>
    tpu.vector_store %arg11[%c40_41, %c0_42], %135 {strides = array<i32>} : memref<64x32xbf16, #tpu.memory_space<vmem>>, vector<8x32xbf16>,
    %c48 = arith.constant 48 : index
    %c0_43 = arith.constant 0 : index
    %137 = vector.load %arg12[%c48, %c0_43] : memref<64x128xf32, #tpu.memory_space<vmem>>, vector<8x128xf32>
    %138 = arith.truncf %134 : vector<8x32xf32> to vector<8x32xbf16>
    %cst_44 = arith.constant dense<0.000000e+00> : vector<8x128xf32>
    %139 = tpu.matmul %138, %8, %cst_44 {dimension_numbers = #tpu.dot_dimension_numbers<[1], [0], [0], [1], [0, 0, 1, 1], [], []>} : vector<8x32xbf16>, vector<32x128xbf16>, vector<8x128xf32> -> vector<8x128xf32>
    %140 = arith.addf %137, %139 : vector<8x128xf32>
    %141 = arith.negf %140 : vector<8x128xf32>
    %142 = math.exp %141 : vector<8x128xf32>
    %cst_45 = arith.constant 1.000000e+00 : f32
    %143 = vector.broadcast %cst_45 : f32 to vector<8x128xf32>
    %144 = arith.addf %143, %142 : vector<8x128xf32>
    %145 = arith.divf %143, %144 : vector<8x128xf32>
    %146 = math.tanh %140 : vector<8x128xf32>
    %147 = vector.extract_strided_slice %145 {offsets = [0, 0], sizes = [8, 32], strides = [1, 1]} : vector<8x128xf32> to vector<8x32xf32>
    %148 = vector.extract_strided_slice %145 {offsets = [0, 32], sizes = [8, 32], strides = [1, 1]} : vector<8x128xf32> to vector<8x32xf32>
    %149 = vector.extract_strided_slice %146 {offsets = [0, 64], sizes = [8, 32], strides = [1, 1]} : vector<8x128xf32> to vector<8x32xf32>
    %150 = vector.extract_strided_slice %145 {offsets = [0, 96], sizes = [8, 32], strides = [1, 1]} : vector<8x128xf32> to vector<8x32xf32>
    %151 = arith.mulf %148, %132 : vector<8x32xf32>
    %152 = arith.mulf %147, %149 : vector<8x32xf32>
    %153 = arith.addf %151, %152 : vector<8x32xf32>
    %154 = math.tanh %153 : vector<8x32xf32>
    %155 = arith.mulf %150, %154 : vector<8x32xf32>
    %156 = arith.truncf %155 : vector<8x32xf32> to vector<8x32xbf16>
    %c48_46 = arith.constant 48 : index
    %c0_47 = arith.constant 0 : index
    %157 = vector.load %arg11[%c48_46, %c0_47] : memref<64x32xbf16, #tpu.memory_space<vmem>>, vector<8x32xbf16>
    tpu.vector_store %arg11[%c48_46, %c0_47], %156 {strides = array<i32>} : memref<64x32xbf16, #tpu.memory_space<vmem>>, vector<8x32xbf16>,
    %c56 = arith.constant 56 : index
    %c0_48 = arith.constant 0 : index
    %158 = vector.load %arg12[%c56, %c0_48] : memref<64x128xf32, #tpu.memory_space<vmem>>, vector<8x128xf32>
    %159 = arith.truncf %155 : vector<8x32xf32> to vector<8x32xbf16>
    %cst_49 = arith.constant dense<0.000000e+00> : vector<8x128xf32>
    %160 = tpu.matmul %159, %8, %cst_49 {dimension_numbers = #tpu.dot_dimension_numbers<[1], [0], [0], [1], [0, 0, 1, 1], [], []>} : vector<8x32xbf16>, vector<32x128xbf16>, vector<8x128xf32> -> vector<8x128xf32>
    %161 = arith.addf %158, %160 : vector<8x128xf32>
    %162 = arith.negf %161 : vector<8x128xf32>
    %163 = math.exp %162 : vector<8x128xf32>
    %cst_50 = arith.constant 1.000000e+00 : f32
    %164 = vector.broadcast %cst_50 : f32 to vector<8x128xf32>
    %165 = arith.addf %164, %163 : vector<8x128xf32>
    %166 = arith.divf %164, %165 : vector<8x128xf32>
    %167 = math.tanh %161 : vector<8x128xf32>
    %168 = vector.extract_strided_slice %166 {offsets = [0, 0], sizes = [8, 32], strides = [1, 1]} : vector<8x128xf32> to vector<8x32xf32>
    %169 = vector.extract_strided_slice %166 {offsets = [0, 32], sizes = [8, 32], strides = [1, 1]} : vector<8x128xf32> to vector<8x32xf32>
    %170 = vector.extract_strided_slice %167 {offsets = [0, 64], sizes = [8, 32], strides = [1, 1]} : vector<8x128xf32> to vector<8x32xf32>
    %171 = vector.extract_strided_slice %166 {offsets = [0, 96], sizes = [8, 32], strides = [1, 1]} : vector<8x128xf32> to vector<8x32xf32>
    %172 = arith.mulf %169, %153 : vector<8x32xf32>
    %173 = arith.mulf %168, %170 : vector<8x32xf32>
    %174 = arith.addf %172, %173 : vector<8x32xf32>
    %175 = math.tanh %174 : vector<8x32xf32>
    %176 = arith.mulf %171, %175 : vector<8x32xf32>
    %177 = arith.truncf %176 : vector<8x32xf32> to vector<8x32xbf16>
    %c56_51 = arith.constant 56 : index
    %c0_52 = arith.constant 0 : index
    %178 = vector.load %arg11[%c56_51, %c0_52] : memref<64x32xbf16, #tpu.memory_space<vmem>>, vector<8x32xbf16>
    tpu.vector_store %arg11[%c56_51, %c0_52], %177 {strides = array<i32>} : memref<64x32xbf16, #tpu.memory_space<vmem>>, vector<8x32xbf16>,
    %c0_53 = arith.constant 0 : index
    %c0_54 = arith.constant 0 : index
    %179 = vector.load %arg11[%c0_53, %c0_54] : memref<64x32xbf16, #tpu.memory_space<vmem>>, vector<64x32xbf16>
    %c0_55 = arith.constant 0 : index
    %c0_56 = arith.constant 0 : index
    %180 = vector.load %arg5[%c0_55, %c0_56] : memref<32x128xbf16, #tpu.memory_space<vmem>>, vector<32x128xbf16>
    %cst_57 = arith.constant dense<0.000000e+00> : vector<64x128xf32>
    %181 = tpu.matmul %179, %180, %cst_57 {dimension_numbers = #tpu.dot_dimension_numbers<[1], [0], [0], [1], [0, 0, 1, 1], [], []>} : vector<64x32xbf16>, vector<32x128xbf16>, vector<64x128xf32> -> vector<64x128xf32>
    %c0_58 = arith.constant 0 : index
    %c0_59 = arith.constant 0 : index
    %182 = vector.load %arg7[%c0_58, %c0_59] : memref<1x128xf32, #tpu.memory_space<vmem>>, vector<1x128xf32>
    %183 = vector.broadcast %182 : vector<1x128xf32> to vector<64x128xf32>
    %184 = arith.addf %181, %183 : vector<64x128xf32>
    %c0_60 = arith.constant 0 : index
    %c0_61 = arith.constant 0 : index
    %185 = vector.load %arg12[%c0_60, %c0_61] : memref<64x128xf32, #tpu.memory_space<vmem>>, vector<64x128xf32>
    tpu.vector_store %arg12[%c0_60, %c0_61], %184 {strides = array<i32>} : memref<64x128xf32, #tpu.memory_space<vmem>>, vector<64x128xf32>,
    %c0_62 = arith.constant 0 : index
    %c0_63 = arith.constant 0 : index
    %186 = vector.load %arg6[%c0_62, %c0_63] : memref<32x128xbf16, #tpu.memory_space<vmem>>, vector<32x128xbf16>
    %cst_64 = arith.constant 0.000000e+00 : f32
    %187 = vector.broadcast %cst_64 : f32 to vector<8x32xf32>
    %cst_65 = arith.constant 0.000000e+00 : f32
    %188 = vector.broadcast %cst_65 : f32 to vector<8x32xf32>
    %c0_66 = arith.constant 0 : index
    %c0_67 = arith.constant 0 : index
    %189 = vector.load %arg12[%c0_66, %c0_67] : memref<64x128xf32, #tpu.memory_space<vmem>>, vector<8x128xf32>
    %190 = arith.truncf %187 : vector<8x32xf32> to vector<8x32xbf16>
    %cst_68 = arith.constant dense<0.000000e+00> : vector<8x128xf32>
    %191 = tpu.matmul %190, %186, %cst_68 {dimension_numbers = #tpu.dot_dimension_numbers<[1], [0], [0], [1], [0, 0, 1, 1], [], []>} : vector<8x32xbf16>, vector<32x128xbf16>, vector<8x128xf32> -> vector<8x128xf32>
    %192 = arith.addf %189, %191 : vector<8x128xf32>
    %193 = arith.negf %192 : vector<8x128xf32>
    %194 = math.exp %193 : vector<8x128xf32>
    %cst_69 = arith.constant 1.000000e+00 : f32
    %195 = vector.broadcast %cst_69 : f32 to vector<8x128xf32>
    %196 = arith.addf %195, %194 : vector<8x128xf32>
    %197 = arith.divf %195, %196 : vector<8x128xf32>
    %198 = math.tanh %192 : vector<8x128xf32>
    %199 = vector.extract_strided_slice %197 {offsets = [0, 0], sizes = [8, 32], strides = [1, 1]} : vector<8x128xf32> to vector<8x32xf32>
    %200 = vector.extract_strided_slice %197 {offsets = [0, 32], sizes = [8, 32], strides = [1, 1]} : vector<8x128xf32> to vector<8x32xf32>
    %201 = vector.extract_strided_slice %198 {offsets = [0, 64], sizes = [8, 32], strides = [1, 1]} : vector<8x128xf32> to vector<8x32xf32>
    %202 = vector.extract_strided_slice %197 {offsets = [0, 96], sizes = [8, 32], strides = [1, 1]} : vector<8x128xf32> to vector<8x32xf32>
    %203 = arith.mulf %200, %188 : vector<8x32xf32>
    %204 = arith.mulf %199, %201 : vector<8x32xf32>
    %205 = arith.addf %203, %204 : vector<8x32xf32>
    %206 = math.tanh %205 : vector<8x32xf32>
    %207 = arith.mulf %202, %206 : vector<8x32xf32>
    %c8_70 = arith.constant 8 : index
    %c0_71 = arith.constant 0 : index
    %208 = vector.load %arg12[%c8_70, %c0_71] : memref<64x128xf32, #tpu.memory_space<vmem>>, vector<8x128xf32>
    %209 = arith.truncf %207 : vector<8x32xf32> to vector<8x32xbf16>
    %cst_72 = arith.constant dense<0.000000e+00> : vector<8x128xf32>
    %210 = tpu.matmul %209, %186, %cst_72 {dimension_numbers = #tpu.dot_dimension_numbers<[1], [0], [0], [1], [0, 0, 1, 1], [], []>} : vector<8x32xbf16>, vector<32x128xbf16>, vector<8x128xf32> -> vector<8x128xf32>
    %211 = arith.addf %208, %210 : vector<8x128xf32>
    %212 = arith.negf %211 : vector<8x128xf32>
    %213 = math.exp %212 : vector<8x128xf32>
    %cst_73 = arith.constant 1.000000e+00 : f32
    %214 = vector.broadcast %cst_73 : f32 to vector<8x128xf32>
    %215 = arith.addf %214, %213 : vector<8x128xf32>
    %216 = arith.divf %214, %215 : vector<8x128xf32>
    %217 = math.tanh %211 : vector<8x128xf32>
    %218 = vector.extract_strided_slice %216 {offsets = [0, 0], sizes = [8, 32], strides = [1, 1]} : vector<8x128xf32> to vector<8x32xf32>
    %219 = vector.extract_strided_slice %216 {offsets = [0, 32], sizes = [8, 32], strides = [1, 1]} : vector<8x128xf32> to vector<8x32xf32>
    %220 = vector.extract_strided_slice %217 {offsets = [0, 64], sizes = [8, 32], strides = [1, 1]} : vector<8x128xf32> to vector<8x32xf32>
    %221 = vector.extract_strided_slice %216 {offsets = [0, 96], sizes = [8, 32], strides = [1, 1]} : vector<8x128xf32> to vector<8x32xf32>
    %222 = arith.mulf %219, %205 : vector<8x32xf32>
    %223 = arith.mulf %218, %220 : vector<8x32xf32>
    %224 = arith.addf %222, %223 : vector<8x32xf32>
    %225 = math.tanh %224 : vector<8x32xf32>
    %226 = arith.mulf %221, %225 : vector<8x32xf32>
    %c16_74 = arith.constant 16 : index
    %c0_75 = arith.constant 0 : index
    %227 = vector.load %arg12[%c16_74, %c0_75] : memref<64x128xf32, #tpu.memory_space<vmem>>, vector<8x128xf32>
    %228 = arith.truncf %226 : vector<8x32xf32> to vector<8x32xbf16>
    %cst_76 = arith.constant dense<0.000000e+00> : vector<8x128xf32>
    %229 = tpu.matmul %228, %186, %cst_76 {dimension_numbers = #tpu.dot_dimension_numbers<[1], [0], [0], [1], [0, 0, 1, 1], [], []>} : vector<8x32xbf16>, vector<32x128xbf16>, vector<8x128xf32> -> vector<8x128xf32>
    %230 = arith.addf %227, %229 : vector<8x128xf32>
    %231 = arith.negf %230 : vector<8x128xf32>
    %232 = math.exp %231 : vector<8x128xf32>
    %cst_77 = arith.constant 1.000000e+00 : f32
    %233 = vector.broadcast %cst_77 : f32 to vector<8x128xf32>
    %234 = arith.addf %233, %232 : vector<8x128xf32>
    %235 = arith.divf %233, %234 : vector<8x128xf32>
    %236 = math.tanh %230 : vector<8x128xf32>
    %237 = vector.extract_strided_slice %235 {offsets = [0, 0], sizes = [8, 32], strides = [1, 1]} : vector<8x128xf32> to vector<8x32xf32>
    %238 = vector.extract_strided_slice %235 {offsets = [0, 32], sizes = [8, 32], strides = [1, 1]} : vector<8x128xf32> to vector<8x32xf32>
    %239 = vector.extract_strided_slice %236 {offsets = [0, 64], sizes = [8, 32], strides = [1, 1]} : vector<8x128xf32> to vector<8x32xf32>
    %240 = vector.extract_strided_slice %235 {offsets = [0, 96], sizes = [8, 32], strides = [1, 1]} : vector<8x128xf32> to vector<8x32xf32>
    %241 = arith.mulf %238, %224 : vector<8x32xf32>
    %242 = arith.mulf %237, %239 : vector<8x32xf32>
    %243 = arith.addf %241, %242 : vector<8x32xf32>
    %244 = math.tanh %243 : vector<8x32xf32>
    %245 = arith.mulf %240, %244 : vector<8x32xf32>
    %c24_78 = arith.constant 24 : index
    %c0_79 = arith.constant 0 : index
    %246 = vector.load %arg12[%c24_78, %c0_79] : memref<64x128xf32, #tpu.memory_space<vmem>>, vector<8x128xf32>
    %247 = arith.truncf %245 : vector<8x32xf32> to vector<8x32xbf16>
    %cst_80 = arith.constant dense<0.000000e+00> : vector<8x128xf32>
    %248 = tpu.matmul %247, %186, %cst_80 {dimension_numbers = #tpu.dot_dimension_numbers<[1], [0], [0], [1], [0, 0, 1, 1], [], []>} : vector<8x32xbf16>, vector<32x128xbf16>, vector<8x128xf32> -> vector<8x128xf32>
    %249 = arith.addf %246, %248 : vector<8x128xf32>
    %250 = arith.negf %249 : vector<8x128xf32>
    %251 = math.exp %250 : vector<8x128xf32>
    %cst_81 = arith.constant 1.000000e+00 : f32
    %252 = vector.broadcast %cst_81 : f32 to vector<8x128xf32>
    %253 = arith.addf %252, %251 : vector<8x128xf32>
    %254 = arith.divf %252, %253 : vector<8x128xf32>
    %255 = math.tanh %249 : vector<8x128xf32>
    %256 = vector.extract_strided_slice %254 {offsets = [0, 0], sizes = [8, 32], strides = [1, 1]} : vector<8x128xf32> to vector<8x32xf32>
    %257 = vector.extract_strided_slice %254 {offsets = [0, 32], sizes = [8, 32], strides = [1, 1]} : vector<8x128xf32> to vector<8x32xf32>
    %258 = vector.extract_strided_slice %255 {offsets = [0, 64], sizes = [8, 32], strides = [1, 1]} : vector<8x128xf32> to vector<8x32xf32>
    %259 = vector.extract_strided_slice %254 {offsets = [0, 96], sizes = [8, 32], strides = [1, 1]} : vector<8x128xf32> to vector<8x32xf32>
    %260 = arith.mulf %257, %243 : vector<8x32xf32>
    %261 = arith.mulf %256, %258 : vector<8x32xf32>
    %262 = arith.addf %260, %261 : vector<8x32xf32>
    %263 = math.tanh %262 : vector<8x32xf32>
    %264 = arith.mulf %259, %263 : vector<8x32xf32>
    %c32_82 = arith.constant 32 : index
    %c0_83 = arith.constant 0 : index
    %265 = vector.load %arg12[%c32_82, %c0_83] : memref<64x128xf32, #tpu.memory_space<vmem>>, vector<8x128xf32>
    %266 = arith.truncf %264 : vector<8x32xf32> to vector<8x32xbf16>
    %cst_84 = arith.constant dense<0.000000e+00> : vector<8x128xf32>
    %267 = tpu.matmul %266, %186, %cst_84 {dimension_numbers = #tpu.dot_dimension_numbers<[1], [0], [0], [1], [0, 0, 1, 1], [], []>} : vector<8x32xbf16>, vector<32x128xbf16>, vector<8x128xf32> -> vector<8x128xf32>
    %268 = arith.addf %265, %267 : vector<8x128xf32>
    %269 = arith.negf %268 : vector<8x128xf32>
    %270 = math.exp %269 : vector<8x128xf32>
    %cst_85 = arith.constant 1.000000e+00 : f32
    %271 = vector.broadcast %cst_85 : f32 to vector<8x128xf32>
    %272 = arith.addf %271, %270 : vector<8x128xf32>
    %273 = arith.divf %271, %272 : vector<8x128xf32>
    %274 = math.tanh %268 : vector<8x128xf32>
    %275 = vector.extract_strided_slice %273 {offsets = [0, 0], sizes = [8, 32], strides = [1, 1]} : vector<8x128xf32> to vector<8x32xf32>
    %276 = vector.extract_strided_slice %273 {offsets = [0, 32], sizes = [8, 32], strides = [1, 1]} : vector<8x128xf32> to vector<8x32xf32>
    %277 = vector.extract_strided_slice %274 {offsets = [0, 64], sizes = [8, 32], strides = [1, 1]} : vector<8x128xf32> to vector<8x32xf32>
    %278 = vector.extract_strided_slice %273 {offsets = [0, 96], sizes = [8, 32], strides = [1, 1]} : vector<8x128xf32> to vector<8x32xf32>
    %279 = arith.mulf %276, %262 : vector<8x32xf32>
    %280 = arith.mulf %275, %277 : vector<8x32xf32>
    %281 = arith.addf %279, %280 : vector<8x32xf32>
    %282 = math.tanh %281 : vector<8x32xf32>
    %283 = arith.mulf %278, %282 : vector<8x32xf32>
    %c40_86 = arith.constant 40 : index
    %c0_87 = arith.constant 0 : index
    %284 = vector.load %arg12[%c40_86, %c0_87] : memref<64x128xf32, #tpu.memory_space<vmem>>, vector<8x128xf32>
    %285 = arith.truncf %283 : vector<8x32xf32> to vector<8x32xbf16>
    %cst_88 = arith.constant dense<0.000000e+00> : vector<8x128xf32>
    %286 = tpu.matmul %285, %186, %cst_88 {dimension_numbers = #tpu.dot_dimension_numbers<[1], [0], [0], [1], [0, 0, 1, 1], [], []>} : vector<8x32xbf16>, vector<32x128xbf16>, vector<8x128xf32> -> vector<8x128xf32>
    %287 = arith.addf %284, %286 : vector<8x128xf32>
    %288 = arith.negf %287 : vector<8x128xf32>
    %289 = math.exp %288 : vector<8x128xf32>
    %cst_89 = arith.constant 1.000000e+00 : f32
    %290 = vector.broadcast %cst_89 : f32 to vector<8x128xf32>
    %291 = arith.addf %290, %289 : vector<8x128xf32>
    %292 = arith.divf %290, %291 : vector<8x128xf32>
    %293 = math.tanh %287 : vector<8x128xf32>
    %294 = vector.extract_strided_slice %292 {offsets = [0, 0], sizes = [8, 32], strides = [1, 1]} : vector<8x128xf32> to vector<8x32xf32>
    %295 = vector.extract_strided_slice %292 {offsets = [0, 32], sizes = [8, 32], strides = [1, 1]} : vector<8x128xf32> to vector<8x32xf32>
    %296 = vector.extract_strided_slice %293 {offsets = [0, 64], sizes = [8, 32], strides = [1, 1]} : vector<8x128xf32> to vector<8x32xf32>
    %297 = vector.extract_strided_slice %292 {offsets = [0, 96], sizes = [8, 32], strides = [1, 1]} : vector<8x128xf32> to vector<8x32xf32>
    %298 = arith.mulf %295, %281 : vector<8x32xf32>
    %299 = arith.mulf %294, %296 : vector<8x32xf32>
    %300 = arith.addf %298, %299 : vector<8x32xf32>
    %301 = math.tanh %300 : vector<8x32xf32>
    %302 = arith.mulf %297, %301 : vector<8x32xf32>
    %c48_90 = arith.constant 48 : index
    %c0_91 = arith.constant 0 : index
    %303 = vector.load %arg12[%c48_90, %c0_91] : memref<64x128xf32, #tpu.memory_space<vmem>>, vector<8x128xf32>
    %304 = arith.truncf %302 : vector<8x32xf32> to vector<8x32xbf16>
    %cst_92 = arith.constant dense<0.000000e+00> : vector<8x128xf32>
    %305 = tpu.matmul %304, %186, %cst_92 {dimension_numbers = #tpu.dot_dimension_numbers<[1], [0], [0], [1], [0, 0, 1, 1], [], []>} : vector<8x32xbf16>, vector<32x128xbf16>, vector<8x128xf32> -> vector<8x128xf32>
    %306 = arith.addf %303, %305 : vector<8x128xf32>
    %307 = arith.negf %306 : vector<8x128xf32>
    %308 = math.exp %307 : vector<8x128xf32>
    %cst_93 = arith.constant 1.000000e+00 : f32
    %309 = vector.broadcast %cst_93 : f32 to vector<8x128xf32>
    %310 = arith.addf %309, %308 : vector<8x128xf32>
    %311 = arith.divf %309, %310 : vector<8x128xf32>
    %312 = math.tanh %306 : vector<8x128xf32>
    %313 = vector.extract_strided_slice %311 {offsets = [0, 0], sizes = [8, 32], strides = [1, 1]} : vector<8x128xf32> to vector<8x32xf32>
    %314 = vector.extract_strided_slice %311 {offsets = [0, 32], sizes = [8, 32], strides = [1, 1]} : vector<8x128xf32> to vector<8x32xf32>
    %315 = vector.extract_strided_slice %312 {offsets = [0, 64], sizes = [8, 32], strides = [1, 1]} : vector<8x128xf32> to vector<8x32xf32>
    %316 = vector.extract_strided_slice %311 {offsets = [0, 96], sizes = [8, 32], strides = [1, 1]} : vector<8x128xf32> to vector<8x32xf32>
    %317 = arith.mulf %314, %300 : vector<8x32xf32>
    %318 = arith.mulf %313, %315 : vector<8x32xf32>
    %319 = arith.addf %317, %318 : vector<8x32xf32>
    %320 = math.tanh %319 : vector<8x32xf32>
    %321 = arith.mulf %316, %320 : vector<8x32xf32>
    %c56_94 = arith.constant 56 : index
    %c0_95 = arith.constant 0 : index
    %322 = vector.load %arg12[%c56_94, %c0_95] : memref<64x128xf32, #tpu.memory_space<vmem>>, vector<8x128xf32>
    %323 = arith.truncf %321 : vector<8x32xf32> to vector<8x32xbf16>
    %cst_96 = arith.constant dense<0.000000e+00> : vector<8x128xf32>
    %324 = tpu.matmul %323, %186, %cst_96 {dimension_numbers = #tpu.dot_dimension_numbers<[1], [0], [0], [1], [0, 0, 1, 1], [], []>} : vector<8x32xbf16>, vector<32x128xbf16>, vector<8x128xf32> -> vector<8x128xf32>
    %325 = arith.addf %322, %324 : vector<8x128xf32>
    %326 = arith.negf %325 : vector<8x128xf32>
    %327 = math.exp %326 : vector<8x128xf32>
    %cst_97 = arith.constant 1.000000e+00 : f32
    %328 = vector.broadcast %cst_97 : f32 to vector<8x128xf32>
    %329 = arith.addf %328, %327 : vector<8x128xf32>
    %330 = arith.divf %328, %329 : vector<8x128xf32>
    %331 = math.tanh %325 : vector<8x128xf32>
    %332 = vector.extract_strided_slice %330 {offsets = [0, 0], sizes = [8, 32], strides = [1, 1]} : vector<8x128xf32> to vector<8x32xf32>
    %333 = vector.extract_strided_slice %330 {offsets = [0, 32], sizes = [8, 32], strides = [1, 1]} : vector<8x128xf32> to vector<8x32xf32>
    %334 = vector.extract_strided_slice %331 {offsets = [0, 64], sizes = [8, 32], strides = [1, 1]} : vector<8x128xf32> to vector<8x32xf32>
    %335 = vector.extract_strided_slice %330 {offsets = [0, 96], sizes = [8, 32], strides = [1, 1]} : vector<8x128xf32> to vector<8x32xf32>
    %336 = arith.mulf %333, %319 : vector<8x32xf32>
    %337 = arith.mulf %332, %334 : vector<8x32xf32>
    %338 = arith.addf %336, %337 : vector<8x32xf32>
    %339 = math.tanh %338 : vector<8x32xf32>
    %340 = arith.mulf %335, %339 : vector<8x32xf32>
    %c0_98 = arith.constant 0 : index
    %c0_99 = arith.constant 0 : index
    %341 = vector.load %arg8[%c0_98, %c0_99] : memref<32x4xf32, #tpu.memory_space<vmem>>, vector<32x4xf32>
    %cst_100 = arith.constant dense<0.000000e+00> : vector<8x4xf32>
    %342 = tpu.matmul %340, %341, %cst_100 {dimension_numbers = #tpu.dot_dimension_numbers<[1], [0], [0], [1], [0, 0, 1, 1], [], []>} : vector<8x32xf32>, vector<32x4xf32>, vector<8x4xf32> -> vector<8x4xf32>
    %c0_101 = arith.constant 0 : index
    %c0_102 = arith.constant 0 : index
    %343 = vector.load %arg9[%c0_101, %c0_102] : memref<1x4xf32, #tpu.memory_space<vmem>>, vector<1x4xf32>
    %344 = vector.broadcast %343 : vector<1x4xf32> to vector<8x4xf32>
    %345 = arith.addf %342, %344 : vector<8x4xf32>
    %c0_103 = arith.constant 0 : index
    %c0_104 = arith.constant 0 : index
    %346 = vector.load %arg10[%c0_103, %c0_104] : memref<8x4xf32, #tpu.memory_space<vmem>>, vector<8x4xf32>
    tpu.vector_store %arg10[%c0_103, %c0_104], %345 {strides = array<i32>} : memref<8x4xf32, #tpu.memory_space<vmem>>, vector<8x4xf32>,
    return
  }
  func.func @transform_0(%arg0: i32) -> (i32, i32, i32) {
    %c0_i32 = arith.constant 0 : i32
    %c0_i32_0 = arith.constant 0 : i32
    %c0_i32_1 = arith.constant 0 : i32
    return %arg0, %c0_i32, %c0_i32_0 : i32, i32, i32
  }
  func.func @transform_1(%arg0: i32) -> (i32, i32) {
    %c0_i32 = arith.constant 0 : i32
    %c0_i32_0 = arith.constant 0 : i32
    %c0_i32_1 = arith.constant 0 : i32
    return %c0_i32, %c0_i32_0 : i32, i32
  }
  func.func @transform_2(%arg0: i32) -> (i32, i32) {
    %c0_i32 = arith.constant 0 : i32
    %c0_i32_0 = arith.constant 0 : i32
    %c0_i32_1 = arith.constant 0 : i32
    return %c0_i32, %c0_i32_0 : i32, i32
  }
  func.func @transform_3(%arg0: i32) -> (i32, i32) {
    %c0_i32 = arith.constant 0 : i32
    %c0_i32_0 = arith.constant 0 : i32
    %c0_i32_1 = arith.constant 0 : i32
    return %c0_i32, %c0_i32_0 : i32, i32
  }
  func.func @transform_4(%arg0: i32) -> (i32, i32) {
    %c0_i32 = arith.constant 0 : i32
    %c0_i32_0 = arith.constant 0 : i32
    %c0_i32_1 = arith.constant 0 : i32
    return %c0_i32, %c0_i32_0 : i32, i32
  }
  func.func @transform_5(%arg0: i32) -> (i32, i32) {
    %c0_i32 = arith.constant 0 : i32
    %c0_i32_0 = arith.constant 0 : i32
    %c0_i32_1 = arith.constant 0 : i32
    return %c0_i32, %c0_i32_0 : i32, i32
  }
  func.func @transform_6(%arg0: i32) -> (i32, i32) {
    %c0_i32 = arith.constant 0 : i32
    %c0_i32_0 = arith.constant 0 : i32
    %c0_i32_1 = arith.constant 0 : i32
    return %c0_i32, %c0_i32_0 : i32, i32
  }
  func.func @transform_7(%arg0: i32) -> (i32, i32) {
    %c0_i32 = arith.constant 0 : i32
    %c0_i32_0 = arith.constant 0 : i32
    %c0_i32_1 = arith.constant 0 : i32
    return %c0_i32, %c0_i32_0 : i32, i32
  }
  func.func @transform_8(%arg0: i32) -> (i32, i32) {
    %c0_i32 = arith.constant 0 : i32
    %c0_i32_0 = arith.constant 0 : i32
    %c0_i32_1 = arith.constant 0 : i32
    return %c0_i32, %c0_i32_0 : i32, i32
  }
  func.func @transform_9(%arg0: i32) -> (i32, i32) {
    %c0_i32 = arith.constant 0 : i32
    %c0_i32_0 = arith.constant 0 : i32
    return %arg0, %c0_i32 : i32, i32
  }
}

</mosaic_0001>

<llo_original>
// kernel: lstm_predictor_forward.1
$region0: #{lstm_predictor_forward.1}
  #allocation0 [shape = 'u32[]', space=smem, size = 0x4, offset = 0x4, fixed_abs, tag = 'smem constant byte address 0x4 - core index']
  #allocation1 [shape = 'u32[72,128]{1,0:T(1,128)}', space=vmem, size = 0x9000, scoped, tag = 'internal scratch']
  #allocation2 [shape = 'bf16[64,32]{1,0:T(8,128)(2,1)}', space=vmem, size = 0x4000, scoped, tag = 'scratch operand']
  #allocation3 [shape = 'f32[64,128]{1,0:T(8,128)}', space=vmem, size = 0x8000, scoped, tag = 'scratch operand']
  %s0 = inlined_call_operand.vmem [shape: bf16[1,64,8], index: 0, kind: input, shape index: {}]
  %s1 = inlined_call_operand.vmem [shape: bf16[8,128], index: 1, kind: input, shape index: {}]
  %s2 = inlined_call_operand.vmem [shape: bf16[32,128], index: 2, kind: input, shape index: {}]
  %s3 = inlined_call_operand.vmem [shape: f32[1,128], index: 3, kind: input, shape index: {}]
  %s4 = inlined_call_operand.vmem [shape: bf16[32,128], index: 4, kind: input, shape index: {}]
  %s5 = inlined_call_operand.vmem [shape: bf16[32,128], index: 5, kind: input, shape index: {}]
  %s6 = inlined_call_operand.vmem [shape: f32[1,128], index: 6, kind: input, shape index: {}]
  %s7 = inlined_call_operand.vmem [shape: f32[32,4], index: 7, kind: input, shape index: {}]
  %s8 = inlined_call_operand.vmem [shape: f32[1,4], index: 8, kind: input, shape index: {}]
  %s9 = inlined_call_operand.vmem [shape: f32[8,4], index: 9, kind: output, shape index: {}]
  %s10 = sld [smem:[#allocation0]]
  $region46: #{lstm_predictor_forward.1} parent=0
    _
  %s12 = ssub.s32 1, %s10
  %s13 = scalar_select 0, %s12, %s10
  // Predicated region
  $region2: #{lstm_predictor_forward.1} parent=0 // pred_check
    _
  $region3: #{lstm_predictor_forward.1} parent=0 // pred_check_branch
    %15 = sbr.rel (0) target = $region5
  $region4: #{lstm_predictor_forward.1} parent=0 // pred_region
    _
  $region5: #{lstm_predictor_forward.1} parent=0 // pred_fallthru
    _
  // Predicated region
  $region6: #{lstm_predictor_forward.1} parent=0 // pred_check
    _
  $region7: #{lstm_predictor_forward.1} parent=0 // pred_check_branch
    %17 = sbr.rel (0) target = $region9
  $region8: #{lstm_predictor_forward.1} parent=0 // pred_region
    _
  $region9: #{lstm_predictor_forward.1} parent=0 // pred_fallthru
    _
  // Predicated region
  $region10: #{lstm_predictor_forward.1} parent=0 // pred_check
    _
  $region11: #{lstm_predictor_forward.1} parent=0 // pred_check_branch
    %19 = sbr.rel (0) target = $region13
  $region12: #{lstm_predictor_forward.1} parent=0 // pred_region
    _
  $region13: #{lstm_predictor_forward.1} parent=0 // pred_fallthru
    _
  // Predicated region
  $region14: #{lstm_predictor_forward.1} parent=0 // pred_check
    _
  $region15: #{lstm_predictor_forward.1} parent=0 // pred_check_branch
    %21 = sbr.rel (0) target = $region17
  $region16: #{lstm_predictor_forward.1} parent=0 // pred_region
    _
  $region17: #{lstm_predictor_forward.1} parent=0 // pred_fallthru
    _
  // Predicated region
  $region18: #{lstm_predictor_forward.1} parent=0 // pred_check
    _
  $region19: #{lstm_predictor_forward.1} parent=0 // pred_check_branch
    %23 = sbr.rel (0) target = $region21
  $region20: #{lstm_predictor_forward.1} parent=0 // pred_region
    _
  $region21: #{lstm_predictor_forward.1} parent=0 // pred_fallthru
    _
  // Predicated region
  $region22: #{lstm_predictor_forward.1} parent=0 // pred_check
    _
  $region23: #{lstm_predictor_forward.1} parent=0 // pred_check_branch
    %25 = sbr.rel (0) target = $region25
  $region24: #{lstm_predictor_forward.1} parent=0 // pred_region
    _
  $region25: #{lstm_predictor_forward.1} parent=0 // pred_fallthru
    _
  // Predicated region
  $region26: #{lstm_predictor_forward.1} parent=0 // pred_check
    _
  $region27: #{lstm_predictor_forward.1} parent=0 // pred_check_branch
    %27 = sbr.rel (0) target = $region29
  $region28: #{lstm_predictor_forward.1} parent=0 // pred_region
    _
  $region29: #{lstm_predictor_forward.1} parent=0 // pred_fallthru
    _
  // Predicated region
  $region30: #{lstm_predictor_forward.1} parent=0 // pred_check
    _
  $region31: #{lstm_predictor_forward.1} parent=0 // pred_check_branch
    %29 = sbr.rel (0) target = $region33
  $region32: #{lstm_predictor_forward.1} parent=0 // pred_region
    _
  $region33: #{lstm_predictor_forward.1} parent=0 // pred_fallthru
    _
  // Predicated region
  $region34: #{lstm_predictor_forward.1} parent=0 // pred_check
    _
  $region35: #{lstm_predictor_forward.1} parent=0 // pred_check_branch
    %31 = sbr.rel (0) target = $region37
  $region36: #{lstm_predictor_forward.1} parent=0 // pred_region
    _
  $region37: #{lstm_predictor_forward.1} parent=0 // pred_fallthru
    _
  %v33 = vld [vmem:[%s0] sm:$0xf]
  %v34 = vld [vmem:[%s0 + $0x4] sm:$0xf]
  %v35 = vld [vmem:[%s0 + $0x8] sm:$0xf]
  %v36 = vld [vmem:[%s0 + $0xc] sm:$0xf]
  %v37 = vld [vmem:[%s0 + $0x10] sm:$0xf]
  %v38 = vld [vmem:[%s0 + $0x14] sm:$0xf]
  %v39 = vld [vmem:[%s0 + $0x18] sm:$0xf]
  %v40 = vld [vmem:[%s0 + $0x1c] sm:$0xf]
  %v41 = vld [vmem:[%s1] sm:$0xf]
  %v42 = vld [vmem:[%s3] sm:$0x1]
  %v44 = vperm.slane %v42, 0
  %v54 = vunpack.c.l.b16 %v33
  %v55 = vunpack.c.l.b16 %v34
  %v56 = vunpack.c.l.b16 %v35
  %v57 = vunpack.c.l.b16 %v36
  %v58 = vunpack.c.l.b16 %v37
  %v59 = vunpack.c.l.b16 %v38
  %v60 = vunpack.c.l.b16 %v39
  %v61 = vunpack.c.l.b16 %v40
  %v62 = vpack.c.b16 %v55, %v54
  %v63 = vpack.c.b16 %v57, %v56
  %v64 = vpack.c.b16 %v59, %v58
  %v65 = vpack.c.b16 %v61, %v60
  %vm66 = vcmask 64512
  %v68 = vsel %vm66, %v62, 0
  %v71 = vsel %vm66, %v63, 0
  %v74 = vsel %vm66, %v64, 0
  %v77 = vsel %vm66, %v65, 0
  %vm79 = vcmask 1043456
  %v81 = vsel %vm79, %v41, 0
  %83 = vmatpush.bf16.msra.mxu0 0
  %84 = vmatpush.bf16.msra.mxu0 0
  %85 = vmatpush.bf16.msra.mxu0 0
  %86 = vmatpush.bf16.msra.mxu0 0
  %87 = vmatpush.bf16.msra.mxu0 0
  %88 = vmatpush.bf16.msra.mxu0 0
  %89 = vmatpush.bf16.msra.mxu0 0
  %90 = vmatpush.bf16.msra.mxu0 %v81
  %91 = vmatmul.bf16.gmra.mxu0 %v68
  %v92 = vpop.f32.mrf.mxu0
  %v93 = vadd.f32 %v44, %v92
  %v94 = vpop.f32.mrf.mxu0
  %v95 = vadd.f32 %v44, %v94
  %96 = vmatmul.bf16.gmra.mxu0 %v71
  %v97 = vpop.f32.mrf.mxu0
  %v98 = vadd.f32 %v44, %v97
  %v99 = vpop.f32.mrf.mxu0
  %v100 = vadd.f32 %v44, %v99
  %101 = vmatmul.bf16.gmra.mxu0 %v74
  %v102 = vpop.f32.mrf.mxu0
  %v103 = vadd.f32 %v44, %v102
  %v104 = vpop.f32.mrf.mxu0
  %v105 = vadd.f32 %v44, %v104
  %106 = vmatmul.bf16.gmra.mxu0 %v77
  %v107 = vpop.f32.mrf.mxu0
  %v108 = vadd.f32 %v44, %v107
  %v109 = vpop.f32.mrf.mxu0
  %v110 = vadd.f32 %v44, %v109
  %111 = vdwg.mxu0
  %112 = vst [vmem:[#allocation3] sm:$0xff] %v93
  %113 = vst [vmem:[#allocation3 + $0x8] sm:$0xff] %v95
  %114 = vst [vmem:[#allocation3 + $0x10] sm:$0xff] %v98
  %115 = vst [vmem:[#allocation3 + $0x18] sm:$0xff] %v100
  %116 = vst [vmem:[#allocation3 + $0x20] sm:$0xff] %v103
  %117 = vst [vmem:[#allocation3 + $0x28] sm:$0xff] %v105
  %118 = vst [vmem:[#allocation3 + $0x30] sm:$0xff] %v108
  %119 = vst [vmem:[#allocation3 + $0x38] sm:$0xff] %v110
  %v120 = vld [vmem:[%s2] sm:$0xf]
  %v121 = vld [vmem:[%s2 + $0x4] sm:$0xf]
  %v122 = vld [vmem:[%s2 + $0x8] sm:$0xf]
  %v123 = vld [vmem:[%s2 + $0xc] sm:$0xf]
  %v124 = vld [vmem:[#allocation3] sm:$0xff]
  %v129 = vunpack.c.l.b16 %v120
  %v130 = vunpack.c.l.b16 %v121
  %v131 = vunpack.c.l.b16 %v122
  %v132 = vunpack.c.l.b16 %v123
  %v133 = vpack.c.b16 %v130, %v129
  %v134 = vpack.c.b16 %v132, %v131
  %vm137 = vcmask 261120
  %v139 = vsel %vm137, 0, 0
  %141 = vmatpush.bf16.msra.mxu0 0
  %142 = vmatpush.bf16.msra.mxu0 0
  %143 = vmatpush.bf16.msra.mxu0 0
  %144 = vmatpush.bf16.msra.mxu0 0
  %145 = vmatpush.bf16.msra.mxu0 0
  %146 = vmatpush.bf16.msra.mxu0 0
  %147 = vmatpush.bf16.msra.mxu0 %v134
  %148 = vmatpush.bf16.msra.mxu0 %v133
  %149 = vmatmul.bf16.gmra.mxu0 %v139
  %v150 = vpop.f32.mrf.mxu0
  %v151 = vadd.f32 0.0, %v150
  %v152 = vpop.f32.mrf.mxu0
  %153 = vdwg.mxu0
  %v154 = vadd.f32 %v124, %v151
  %v155 = vxor.u32 %v154, 2147483648
  %v156 = vmul.f32 %v155, 1.442695
  %v157 = vpow.pop %v156
  %v158 = vadd.f32 %v157, 1.0
  %v159 = vrcp.pop %v158
  %v160 = vmul.f32 %v158, %v159
  %v161 = vsub.f32 1.0, %v160
  %v162 = vmul.f32 %v159, %v161
  %v163 = vadd.f32 %v159, %v162
  %vm164 = vweird.f32 %v158
  %vm165 = vweird.f32 %v159
  %vm166 = vmor %vm164, %vm165
  %v167 = vsel %vm166, %v159, %v163
  %v168 = vand.u32 2147483647, %v158
  %vm169 = vcmp.eq.f32.partialorder %v168, 8.507059e+37
  %v170 = vand.u32 %v158, 2147483648
  %v171 = vor.u32 1.1754944e-38, %v170
  %v172 = vsel %vm169, %v171, %v167
  %v173 = vmul.f32 1.0, %v172
  %v174 = vtanh.pop %v154
  %v175 = vmul.f32 %v173, 0.0
  %177 = vrot.lane.b32.xlu0 %v174, 64
  %v178 = vpop.permute.xlu0 %177
  %v180 = vmul.f32 %v173, %v178
  %182 = vrot.lane.b32.xlu0 %v180, 32
  %v183 = vpop.permute.xlu0 %182
  %v185 = vadd.f32 %v175, %v183
  %v186 = vtanh.pop %v185
  %188 = vrot.lane.b32.xlu0 %v186, 64
  %v189 = vpop.permute.xlu0 %188
  %v191 = vmul.f32 %v173, %v189
  %v192 = vpack.c.bf16 %v191, %v191
  %194 = vrot.lane.b32.xlu0 %v192, 32
  %v195 = vpop.permute.xlu0 %194
  %vm197 = vcmask 257024
  %198 = vst.msk [vmem:[#allocation2] sm:$0xf] %vm197, %v195
  %v199 = vld [vmem:[#allocation3 + $0x8] sm:$0xff]
  %v200 = vunpack.c.l.b16 %v192
  %v201 = vpack.c.b16 %v200, %v200
  %202 = vrot.lane.b32.xlu0 %v201, 32
  %v203 = vpop.permute.xlu0 %202
  %v205 = vsel %vm137, %v203, 0
  %207 = vmatpush.bf16.msra.mxu0 0
  %208 = vmatpush.bf16.msra.mxu0 0
  %209 = vmatpush.bf16.msra.mxu0 0
  %210 = vmatpush.bf16.msra.mxu0 0
  %211 = vmatpush.bf16.msra.mxu0 0
  %212 = vmatpush.bf16.msra.mxu0 0
  %213 = vmatpush.bf16.msra.mxu0 %v134
  %214 = vmatpush.bf16.msra.mxu0 %v133
  %215 = vmatmul.bf16.gmra.mxu0 %v205
  %v216 = vpop.f32.mrf.mxu0
  %v217 = vadd.f32 0.0, %v216
  %v218 = vpop.f32.mrf.mxu0
  %219 = vdwg.mxu0
  %v220 = vadd.f32 %v199, %v217
  %v221 = vxor.u32 %v220, 2147483648
  %v222 = vmul.f32 %v221, 1.442695
  %v223 = vpow.pop %v222
  %v224 = vadd.f32 %v223, 1.0
  %v225 = vrcp.pop %v224
  %v226 = vmul.f32 %v224, %v225
  %v227 = vsub.f32 1.0, %v226
  %v228 = vmul.f32 %v225, %v227
  %v229 = vadd.f32 %v225, %v228
  %vm230 = vweird.f32 %v224
  %vm231 = vweird.f32 %v225
  %vm232 = vmor %vm230, %vm231
  %v233 = vsel %vm232, %v225, %v229
  %v234 = vand.u32 2147483647, %v224
  %vm235 = vcmp.eq.f32.partialorder %v234, 8.507059e+37
  %v236 = vand.u32 %v224, 2147483648
  %v237 = vor.u32 1.1754944e-38, %v236
  %v238 = vsel %vm235, %v237, %v233
  %v239 = vmul.f32 1.0, %v238
  %v240 = vtanh.pop %v220
  %v241 = vmul.f32 %v239, %v185
  %243 = vrot.lane.b32.xlu0 %v240, 64
  %v244 = vpop.permute.xlu0 %243
  %v246 = vmul.f32 %v239, %v244
  %248 = vrot.lane.b32.xlu0 %v246, 32
  %v249 = vpop.permute.xlu0 %248
  %v251 = vadd.f32 %v241, %v249
  %v252 = vtanh.pop %v251
  %254 = vrot.lane.b32.xlu0 %v252, 64
  %v255 = vpop.permute.xlu0 %254
  %v257 = vmul.f32 %v239, %v255
  %v258 = vpack.c.bf16 %v257, %v257
  %260 = vrot.lane.b32.xlu0 %v258, 32
  %v261 = vpop.permute.xlu0 %260
  %263 = vst.msk [vmem:[#allocation2 + $0x4] sm:$0xf] %vm197, %v261
  %v264 = vld [vmem:[#allocation3 + $0x10] sm:$0xff]
  %v265 = vunpack.c.l.b16 %v258
  %v266 = vpack.c.b16 %v265, %v265
  %267 = vrot.lane.b32.xlu0 %v266, 32
  %v268 = vpop.permute.xlu0 %267
  %v270 = vsel %vm137, %v268, 0
  %272 = vmatpush.bf16.msra.mxu0 0
  %273 = vmatpush.bf16.msra.mxu0 0
  %274 = vmatpush.bf16.msra.mxu0 0
  %275 = vmatpush.bf16.msra.mxu0 0
  %276 = vmatpush.bf16.msra.mxu0 0
  %277 = vmatpush.bf16.msra.mxu0 0
  %278 = vmatpush.bf16.msra.mxu0 %v134
  %279 = vmatpush.bf16.msra.mxu0 %v133
  %280 = vmatmul.bf16.gmra.mxu0 %v270
  %v281 = vpop.f32.mrf.mxu0
  %v282 = vadd.f32 0.0, %v281
  %v283 = vpop.f32.mrf.mxu0
  %284 = vdwg.mxu0
  %v285 = vadd.f32 %v264, %v282
  %v286 = vxor.u32 %v285, 2147483648
  %v287 = vmul.f32 %v286, 1.442695
  %v288 = vpow.pop %v287
  %v289 = vadd.f32 %v288, 1.0
  %v290 = vrcp.pop %v289
  %v291 = vmul.f32 %v289, %v290
  %v292 = vsub.f32 1.0, %v291
  %v293 = vmul.f32 %v290, %v292
  %v294 = vadd.f32 %v290, %v293
  %vm295 = vweird.f32 %v289
  %vm296 = vweird.f32 %v290
  %vm297 = vmor %vm295, %vm296
  %v298 = vsel %vm297, %v290, %v294
  %v299 = vand.u32 2147483647, %v289
  %vm300 = vcmp.eq.f32.partialorder %v299, 8.507059e+37
  %v301 = vand.u32 %v289, 2147483648
  %v302 = vor.u32 1.1754944e-38, %v301
  %v303 = vsel %vm300, %v302, %v298
  %v304 = vmul.f32 1.0, %v303
  %v305 = vtanh.pop %v285
  %v306 = vmul.f32 %v304, %v251
  %308 = vrot.lane.b32.xlu0 %v305, 64
  %v309 = vpop.permute.xlu0 %308
  %v311 = vmul.f32 %v304, %v309
  %313 = vrot.lane.b32.xlu0 %v311, 32
  %v314 = vpop.permute.xlu0 %313
  %v316 = vadd.f32 %v306, %v314
  %v317 = vtanh.pop %v316
  %319 = vrot.lane.b32.xlu0 %v317, 64
  %v320 = vpop.permute.xlu0 %319
  %v322 = vmul.f32 %v304, %v320
  %v323 = vpack.c.bf16 %v322, %v322
  %325 = vrot.lane.b32.xlu0 %v323, 32
  %v326 = vpop.permute.xlu0 %325
  %328 = vst.msk [vmem:[#allocation2 + $0x8] sm:$0xf] %vm197, %v326
  %v329 = vld [vmem:[#allocation3 + $0x18] sm:$0xff]
  %v330 = vunpack.c.l.b16 %v323
  %v331 = vpack.c.b16 %v330, %v330
  %332 = vrot.lane.b32.xlu0 %v331, 32
  %v333 = vpop.permute.xlu0 %332
  %v335 = vsel %vm137, %v333, 0
  %337 = vmatpush.bf16.msra.mxu0 0
  %338 = vmatpush.bf16.msra.mxu0 0
  %339 = vmatpush.bf16.msra.mxu0 0
  %340 = vmatpush.bf16.msra.mxu0 0
  %341 = vmatpush.bf16.msra.mxu0 0
  %342 = vmatpush.bf16.msra.mxu0 0
  %343 = vmatpush.bf16.msra.mxu0 %v134
  %344 = vmatpush.bf16.msra.mxu0 %v133
  %345 = vmatmul.bf16.gmra.mxu0 %v335
  %v346 = vpop.f32.mrf.mxu0
  %v347 = vadd.f32 0.0, %v346
  %v348 = vpop.f32.mrf.mxu0
  %349 = vdwg.mxu0
  %v350 = vadd.f32 %v329, %v347
  %v351 = vxor.u32 %v350, 2147483648
  %v352 = vmul.f32 %v351, 1.442695
  %v353 = vpow.pop %v352
  %v354 = vadd.f32 %v353, 1.0
  %v355 = vrcp.pop %v354
  %v356 = vmul.f32 %v354, %v355
  %v357 = vsub.f32 1.0, %v356
  %v358 = vmul.f32 %v355, %v357
  %v359 = vadd.f32 %v355, %v358
  %vm360 = vweird.f32 %v354
  %vm361 = vweird.f32 %v355
  %vm362 = vmor %vm360, %vm361
  %v363 = vsel %vm362, %v355, %v359
  %v364 = vand.u32 2147483647, %v354
  %vm365 = vcmp.eq.f32.partialorder %v364, 8.507059e+37
  %v366 = vand.u32 %v354, 2147483648
  %v367 = vor.u32 1.1754944e-38, %v366
  %v368 = vsel %vm365, %v367, %v363
  %v369 = vmul.f32 1.0, %v368
  %v370 = vtanh.pop %v350
  %v371 = vmul.f32 %v369, %v316
  %373 = vrot.lane.b32.xlu0 %v370, 64
  %v374 = vpop.permute.xlu0 %373
  %v376 = vmul.f32 %v369, %v374
  %378 = vrot.lane.b32.xlu0 %v376, 32
  %v379 = vpop.permute.xlu0 %378
  %v381 = vadd.f32 %v371, %v379
  %v382 = vtanh.pop %v381
  %384 = vrot.lane.b32.xlu0 %v382, 64
  %v385 = vpop.permute.xlu0 %384
  %v387 = vmul.f32 %v369, %v385
  %v388 = vpack.c.bf16 %v387, %v387
  %390 = vrot.lane.b32.xlu0 %v388, 32
  %v391 = vpop.permute.xlu0 %390
  %393 = vst.msk [vmem:[#allocation2 + $0xc] sm:$0xf] %vm197, %v391
  %v394 = vld [vmem:[#allocation3 + $0x20] sm:$0xff]
  %v395 = vunpack.c.l.b16 %v388
  %v396 = vpack.c.b16 %v395, %v395
  %397 = vrot.lane.b32.xlu0 %v396, 32
  %v398 = vpop.permute.xlu0 %397
  %v400 = vsel %vm137, %v398, 0
  %402 = vmatpush.bf16.msra.mxu0 0
  %403 = vmatpush.bf16.msra.mxu0 0
  %404 = vmatpush.bf16.msra.mxu0 0
  %405 = vmatpush.bf16.msra.mxu0 0
  %406 = vmatpush.bf16.msra.mxu0 0
  %407 = vmatpush.bf16.msra.mxu0 0
  %408 = vmatpush.bf16.msra.mxu0 %v134
  %409 = vmatpush.bf16.msra.mxu0 %v133
  %410 = vmatmul.bf16.gmra.mxu0 %v400
  %v411 = vpop.f32.mrf.mxu0
  %v412 = vadd.f32 0.0, %v411
  %v413 = vpop.f32.mrf.mxu0
  %414 = vdwg.mxu0
  %v415 = vadd.f32 %v394, %v412
  %v416 = vxor.u32 %v415, 2147483648
  %v417 = vmul.f32 %v416, 1.442695
  %v418 = vpow.pop %v417
  %v419 = vadd.f32 %v418, 1.0
  %v420 = vrcp.pop %v419
  %v421 = vmul.f32 %v419, %v420
  %v422 = vsub.f32 1.0, %v421
  %v423 = vmul.f32 %v420, %v422
  %v424 = vadd.f32 %v420, %v423
  %vm425 = vweird.f32 %v419
  %vm426 = vweird.f32 %v420
  %vm427 = vmor %vm425, %vm426
  %v428 = vsel %vm427, %v420, %v424
  %v429 = vand.u32 2147483647, %v419
  %vm430 = vcmp.eq.f32.partialorder %v429, 8.507059e+37
  %v431 = vand.u32 %v419, 2147483648
  %v432 = vor.u32 1.1754944e-38, %v431
  %v433 = vsel %vm430, %v432, %v428
  %v434 = vmul.f32 1.0, %v433
  %v435 = vtanh.pop %v415
  %v436 = vmul.f32 %v434, %v381
  %438 = vrot.lane.b32.xlu0 %v435, 64
  %v439 = vpop.permute.xlu0 %438
  %v441 = vmul.f32 %v434, %v439
  %443 = vrot.lane.b32.xlu0 %v441, 32
  %v444 = vpop.permute.xlu0 %443
  %v446 = vadd.f32 %v436, %v444
  %v447 = vtanh.pop %v446
  %449 = vrot.lane.b32.xlu0 %v447, 64
  %v450 = vpop.permute.xlu0 %449
  %v452 = vmul.f32 %v434, %v450
  %v453 = vpack.c.bf16 %v452, %v452
  %455 = vrot.lane.b32.xlu0 %v453, 32
  %v456 = vpop.permute.xlu0 %455
  %458 = vst.msk [vmem:[#allocation2 + $0x10] sm:$0xf] %vm197, %v456
  %v459 = vld [vmem:[#allocation3 + $0x28] sm:$0xff]
  %v460 = vunpack.c.l.b16 %v453
  %v461 = vpack.c.b16 %v460, %v460
  %462 = vrot.lane.b32.xlu0 %v461, 32
  %v463 = vpop.permute.xlu0 %462
  %v465 = vsel %vm137, %v463, 0
  %467 = vmatpush.bf16.msra.mxu0 0
  %468 = vmatpush.bf16.msra.mxu0 0
  %469 = vmatpush.bf16.msra.mxu0 0
  %470 = vmatpush.bf16.msra.mxu0 0
  %471 = vmatpush.bf16.msra.mxu0 0
  %472 = vmatpush.bf16.msra.mxu0 0
  %473 = vmatpush.bf16.msra.mxu0 %v134
  %474 = vmatpush.bf16.msra.mxu0 %v133
  %475 = vmatmul.bf16.gmra.mxu0 %v465
  %v476 = vpop.f32.mrf.mxu0
  %v477 = vadd.f32 0.0, %v476
  %v478 = vpop.f32.mrf.mxu0
  %479 = vdwg.mxu0
  %v480 = vadd.f32 %v459, %v477
  %v481 = vxor.u32 %v480, 2147483648
  %v482 = vmul.f32 %v481, 1.442695
  %v483 = vpow.pop %v482
  %v484 = vadd.f32 %v483, 1.0
  %v485 = vrcp.pop %v484
  %v486 = vmul.f32 %v484, %v485
  %v487 = vsub.f32 1.0, %v486
  %v488 = vmul.f32 %v485, %v487
  %v489 = vadd.f32 %v485, %v488
  %vm490 = vweird.f32 %v484
  %vm491 = vweird.f32 %v485
  %vm492 = vmor %vm490, %vm491
  %v493 = vsel %vm492, %v485, %v489
  %v494 = vand.u32 2147483647, %v484
  %vm495 = vcmp.eq.f32.partialorder %v494, 8.507059e+37
  %v496 = vand.u32 %v484, 2147483648
  %v497 = vor.u32 1.1754944e-38, %v496
  %v498 = vsel %vm495, %v497, %v493
  %v499 = vmul.f32 1.0, %v498
  %v500 = vtanh.pop %v480
  %v501 = vmul.f32 %v499, %v446
  %503 = vrot.lane.b32.xlu0 %v500, 64
  %v504 = vpop.permute.xlu0 %503
  %v506 = vmul.f32 %v499, %v504
  %508 = vrot.lane.b32.xlu0 %v506, 32
  %v509 = vpop.permute.xlu0 %508
  %v511 = vadd.f32 %v501, %v509
  %v512 = vtanh.pop %v511
  %514 = vrot.lane.b32.xlu0 %v512, 64
  %v515 = vpop.permute.xlu0 %514
  %v517 = vmul.f32 %v499, %v515
  %v518 = vpack.c.bf16 %v517, %v517
  %520 = vrot.lane.b32.xlu0 %v518, 32
  %v521 = vpop.permute.xlu0 %520
  %523 = vst.msk [vmem:[#allocation2 + $0x14] sm:$0xf] %vm197, %v521
  %v524 = vld [vmem:[#allocation3 + $0x30] sm:$0xff]
  %v525 = vunpack.c.l.b16 %v518
  %v526 = vpack.c.b16 %v525, %v525
  %527 = vrot.lane.b32.xlu0 %v526, 32
  %v528 = vpop.permute.xlu0 %527
  %v530 = vsel %vm137, %v528, 0
  %532 = vmatpush.bf16.msra.mxu0 0
  %533 = vmatpush.bf16.msra.mxu0 0
  %534 = vmatpush.bf16.msra.mxu0 0
  %535 = vmatpush.bf16.msra.mxu0 0
  %536 = vmatpush.bf16.msra.mxu0 0
  %537 = vmatpush.bf16.msra.mxu0 0
  %538 = vmatpush.bf16.msra.mxu0 %v134
  %539 = vmatpush.bf16.msra.mxu0 %v133
  %540 = vmatmul.bf16.gmra.mxu0 %v530
  %v541 = vpop.f32.mrf.mxu0
  %v542 = vadd.f32 0.0, %v541
  %v543 = vpop.f32.mrf.mxu0
  %544 = vdwg.mxu0
  %v545 = vadd.f32 %v524, %v542
  %v546 = vxor.u32 %v545, 2147483648
  %v547 = vmul.f32 %v546, 1.442695
  %v548 = vpow.pop %v547
  %v549 = vadd.f32 %v548, 1.0
  %v550 = vrcp.pop %v549
  %v551 = vmul.f32 %v549, %v550
  %v552 = vsub.f32 1.0, %v551
  %v553 = vmul.f32 %v550, %v552
  %v554 = vadd.f32 %v550, %v553
  %vm555 = vweird.f32 %v549
  %vm556 = vweird.f32 %v550
  %vm557 = vmor %vm555, %vm556
  %v558 = vsel %vm557, %v550, %v554
  %v559 = vand.u32 2147483647, %v549
  %vm560 = vcmp.eq.f32.partialorder %v559, 8.507059e+37
  %v561 = vand.u32 %v549, 2147483648
  %v562 = vor.u32 1.1754944e-38, %v561
  %v563 = vsel %vm560, %v562, %v558
  %v564 = vmul.f32 1.0, %v563
  %v565 = vtanh.pop %v545
  %v566 = vmul.f32 %v564, %v511
  %568 = vrot.lane.b32.xlu0 %v565, 64
  %v569 = vpop.permute.xlu0 %568
  %v571 = vmul.f32 %v564, %v569
  %573 = vrot.lane.b32.xlu0 %v571, 32
  %v574 = vpop.permute.xlu0 %573
  %v576 = vadd.f32 %v566, %v574
  %v577 = vtanh.pop %v576
  %579 = vrot.lane.b32.xlu0 %v577, 64
  %v580 = vpop.permute.xlu0 %579
  %v582 = vmul.f32 %v564, %v580
  %v583 = vpack.c.bf16 %v582, %v582
  %585 = vrot.lane.b32.xlu0 %v583, 32
  %v586 = vpop.permute.xlu0 %585
  %588 = vst.msk [vmem:[#allocation2 + $0x18] sm:$0xf] %vm197, %v586
  %v589 = vld [vmem:[#allocation3 + $0x38] sm:$0xff]
  %v590 = vunpack.c.l.b16 %v583
  %v591 = vpack.c.b16 %v590, %v590
  %592 = vrot.lane.b32.xlu0 %v591, 32
  %v593 = vpop.permute.xlu0 %592
  %v595 = vsel %vm137, %v593, 0
  %597 = vmatpush.bf16.msra.mxu0 0
  %598 = vmatpush.bf16.msra.mxu0 0
  %599 = vmatpush.bf16.msra.mxu0 0
  %600 = vmatpush.bf16.msra.mxu0 0
  %601 = vmatpush.bf16.msra.mxu0 0
  %602 = vmatpush.bf16.msra.mxu0 0
  %603 = vmatpush.bf16.msra.mxu0 %v134
  %604 = vmatpush.bf16.msra.mxu0 %v133
  %605 = vmatmul.bf16.gmra.mxu0 %v595
  %v606 = vpop.f32.mrf.mxu0
  %v607 = vadd.f32 0.0, %v606
  %v608 = vpop.f32.mrf.mxu0
  %609 = vdwg.mxu0
  %v610 = vadd.f32 %v589, %v607
  %v611 = vxor.u32 %v610, 2147483648
  %v612 = vmul.f32 %v611, 1.442695
  %v613 = vpow.pop %v612
  %v614 = vadd.f32 %v613, 1.0
  %v615 = vrcp.pop %v614
  %v616 = vmul.f32 %v614, %v615
  %v617 = vsub.f32 1.0, %v616
  %v618 = vmul.f32 %v615, %v617
  %v619 = vadd.f32 %v615, %v618
  %vm620 = vweird.f32 %v614
  %vm621 = vweird.f32 %v615
  %vm622 = vmor %vm620, %vm621
  %v623 = vsel %vm622, %v615, %v619
  %v624 = vand.u32 2147483647, %v614
  %vm625 = vcmp.eq.f32.partialorder %v624, 8.507059e+37
  %v626 = vand.u32 %v614, 2147483648
  %v627 = vor.u32 1.1754944e-38, %v626
  %v628 = vsel %vm625, %v627, %v623
  %v629 = vmul.f32 1.0, %v628
  %v630 = vtanh.pop %v610
  %v631 = vmul.f32 %v629, %v576
  %633 = vrot.lane.b32.xlu0 %v630, 64
  %v634 = vpop.permute.xlu0 %633
  %v636 = vmul.f32 %v629, %v634
  %638 = vrot.lane.b32.xlu0 %v636, 32
  %v639 = vpop.permute.xlu0 %638
  %v641 = vadd.f32 %v631, %v639
  %v642 = vtanh.pop %v641
  %644 = vrot.lane.b32.xlu0 %v642, 64
  %v645 = vpop.permute.xlu0 %644
  %v647 = vmul.f32 %v629, %v645
  %v648 = vpack.c.bf16 %v647, %v647
  %650 = vrot.lane.b32.xlu0 %v648, 32
  %v651 = vpop.permute.xlu0 %650
  %653 = vst.msk [vmem:[#allocation2 + $0x1c] sm:$0xf] %vm197, %v651
  %v654 = vld [vmem:[#allocation2] sm:$0xf]
  %v655 = vld [vmem:[#allocation2 + $0x4] sm:$0xf]
  %v656 = vld [vmem:[#allocation2 + $0x8] sm:$0xf]
  %v657 = vld [vmem:[#allocation2 + $0xc] sm:$0xf]
  %v658 = vld [vmem:[#allocation2 + $0x10] sm:$0xf]
  %v659 = vld [vmem:[#allocation2 + $0x14] sm:$0xf]
  %v660 = vld [vmem:[#allocation2 + $0x18] sm:$0xf]
  %v661 = vld [vmem:[#allocation2 + $0x1c] sm:$0xf]
  %v662 = vld [vmem:[%s4] sm:$0xf]
  %v663 = vld [vmem:[%s4 + $0x4] sm:$0xf]
  %v664 = vld [vmem:[%s4 + $0x8] sm:$0xf]
  %v665 = vld [vmem:[%s4 + $0xc] sm:$0xf]
  %v666 = vld [vmem:[%s6] sm:$0x1]
  %v668 = vperm.slane %v666, 0
  %v678 = vunpack.c.l.b16 %v654
  %v679 = vunpack.c.l.b16 %v655
  %v680 = vunpack.c.l.b16 %v656
  %v681 = vunpack.c.l.b16 %v657
  %v682 = vunpack.c.l.b16 %v658
  %v683 = vunpack.c.l.b16 %v659
  %v684 = vunpack.c.l.b16 %v660
  %v685 = vunpack.c.l.b16 %v661
  %v686 = vpack.c.b16 %v679, %v678
  %v687 = vpack.c.b16 %v681, %v680
  %v688 = vpack.c.b16 %v683, %v682
  %v689 = vpack.c.b16 %v685, %v684
  %v694 = vunpack.c.l.b16 %v662
  %v695 = vunpack.c.l.b16 %v663
  %v696 = vunpack.c.l.b16 %v664
  %v697 = vunpack.c.l.b16 %v665
  %v698 = vpack.c.b16 %v695, %v694
  %v699 = vpack.c.b16 %v697, %v696
  %v703 = vsel %vm137, %v686, 0
  %v706 = vsel %vm137, %v687, 0
  %v709 = vsel %vm137, %v688, 0
  %v712 = vsel %vm137, %v689, 0
  %714 = vmatpush.bf16.msra.mxu0 0
  %715 = vmatpush.bf16.msra.mxu0 0
  %716 = vmatpush.bf16.msra.mxu0 0
  %717 = vmatpush.bf16.msra.mxu0 0
  %718 = vmatpush.bf16.msra.mxu0 0
  %719 = vmatpush.bf16.msra.mxu0 0
  %720 = vmatpush.bf16.msra.mxu0 %v699
  %721 = vmatpush.bf16.msra.mxu0 %v698
  %722 = vmatmul.bf16.gmra.mxu0 %v703
  %v723 = vpop.f32.mrf.mxu0
  %v724 = vadd.f32 %v668, %v723
  %v725 = vpop.f32.mrf.mxu0
  %v726 = vadd.f32 %v668, %v725
  %727 = vmatmul.bf16.gmra.mxu0 %v706
  %v728 = vpop.f32.mrf.mxu0
  %v729 = vadd.f32 %v668, %v728
  %v730 = vpop.f32.mrf.mxu0
  %v731 = vadd.f32 %v668, %v730
  %732 = vmatmul.bf16.gmra.mxu0 %v709
  %v733 = vpop.f32.mrf.mxu0
  %v734 = vadd.f32 %v668, %v733
  %v735 = vpop.f32.mrf.mxu0
  %v736 = vadd.f32 %v668, %v735
  %737 = vmatmul.bf16.gmra.mxu0 %v712
  %v738 = vpop.f32.mrf.mxu0
  %v739 = vadd.f32 %v668, %v738
  %v740 = vpop.f32.mrf.mxu0
  %v741 = vadd.f32 %v668, %v740
  %742 = vdwg.mxu0
  %743 = vst [vmem:[#allocation3] sm:$0xff] %v724
  %744 = vst [vmem:[#allocation3 + $0x8] sm:$0xff] %v726
  %745 = vst [vmem:[#allocation3 + $0x10] sm:$0xff] %v729
  %746 = vst [vmem:[#allocation3 + $0x18] sm:$0xff] %v731
  %747 = vst [vmem:[#allocation3 + $0x20] sm:$0xff] %v734
  %748 = vst [vmem:[#allocation3 + $0x28] sm:$0xff] %v736
  %749 = vst [vmem:[#allocation3 + $0x30] sm:$0xff] %v739
  %750 = vst [vmem:[#allocation3 + $0x38] sm:$0xff] %v741
  %v751 = vld [vmem:[%s5] sm:$0xf]
  %v752 = vld [vmem:[%s5 + $0x4] sm:$0xf]
  %v753 = vld [vmem:[%s5 + $0x8] sm:$0xf]
  %v754 = vld [vmem:[%s5 + $0xc] sm:$0xf]
  %v755 = vld [vmem:[#allocation3] sm:$0xff]
  %v760 = vunpack.c.l.b16 %v751
  %v761 = vunpack.c.l.b16 %v752
  %v762 = vunpack.c.l.b16 %v753
  %v763 = vunpack.c.l.b16 %v754
  %v764 = vpack.c.b16 %v761, %v760
  %v765 = vpack.c.b16 %v763, %v762
  %768 = vmatpush.bf16.msra.mxu0 0
  %769 = vmatpush.bf16.msra.mxu0 0
  %770 = vmatpush.bf16.msra.mxu0 0
  %771 = vmatpush.bf16.msra.mxu0 0
  %772 = vmatpush.bf16.msra.mxu0 0
  %773 = vmatpush.bf16.msra.mxu0 0
  %774 = vmatpush.bf16.msra.mxu0 %v765
  %775 = vmatpush.bf16.msra.mxu0 %v764
  %776 = vmatmul.bf16.gmra.mxu0 %v139
  %v777 = vpop.f32.mrf.mxu0
  %v778 = vadd.f32 0.0, %v777
  %v779 = vpop.f32.mrf.mxu0
  %780 = vdwg.mxu0
  %v781 = vadd.f32 %v755, %v778
  %v782 = vxor.u32 %v781, 2147483648
  %v783 = vmul.f32 %v782, 1.442695
  %v784 = vpow.pop %v783
  %v785 = vadd.f32 %v784, 1.0
  %v786 = vrcp.pop %v785
  %v787 = vmul.f32 %v785, %v786
  %v788 = vsub.f32 1.0, %v787
  %v789 = vmul.f32 %v786, %v788
  %v790 = vadd.f32 %v786, %v789
  %vm791 = vweird.f32 %v785
  %vm792 = vweird.f32 %v786
  %vm793 = vmor %vm791, %vm792
  %v794 = vsel %vm793, %v786, %v790
  %v795 = vand.u32 2147483647, %v785
  %vm796 = vcmp.eq.f32.partialorder %v795, 8.507059e+37
  %v797 = vand.u32 %v785, 2147483648
  %v798 = vor.u32 1.1754944e-38, %v797
  %v799 = vsel %vm796, %v798, %v794
  %v800 = vmul.f32 1.0, %v799
  %v801 = vtanh.pop %v781
  %v802 = vmul.f32 %v800, 0.0
  %804 = vrot.lane.b32.xlu0 %v801, 64
  %v805 = vpop.permute.xlu0 %804
  %v807 = vmul.f32 %v800, %v805
  %809 = vrot.lane.b32.xlu0 %v807, 32
  %v810 = vpop.permute.xlu0 %809
  %v812 = vadd.f32 %v802, %v810
  %v813 = vtanh.pop %v812
  %815 = vrot.lane.b32.xlu0 %v813, 64
  %v816 = vpop.permute.xlu0 %815
  %v818 = vmul.f32 %v800, %v816
  %v819 = vld [vmem:[#allocation3 + $0x8] sm:$0xff]
  %v820 = vpack.c.bf16 %v818, %v818
  %822 = vrot.lane.b32.xlu0 %v820, 32
  %v823 = vpop.permute.xlu0 %822
  %v825 = vsel %vm137, %v823, 0
  %827 = vmatpush.bf16.msra.mxu0 0
  %828 = vmatpush.bf16.msra.mxu0 0
  %829 = vmatpush.bf16.msra.mxu0 0
  %830 = vmatpush.bf16.msra.mxu0 0
  %831 = vmatpush.bf16.msra.mxu0 0
  %832 = vmatpush.bf16.msra.mxu0 0
  %833 = vmatpush.bf16.msra.mxu0 %v765
  %834 = vmatpush.bf16.msra.mxu0 %v764
  %835 = vmatmul.bf16.gmra.mxu0 %v825
  %v836 = vpop.f32.mrf.mxu0
  %v837 = vadd.f32 0.0, %v836
  %v838 = vpop.f32.mrf.mxu0
  %839 = vdwg.mxu0
  %v840 = vadd.f32 %v819, %v837
  %v841 = vxor.u32 %v840, 2147483648
  %v842 = vmul.f32 %v841, 1.442695
  %v843 = vpow.pop %v842
  %v844 = vadd.f32 %v843, 1.0
  %v845 = vrcp.pop %v844
  %v846 = vmul.f32 %v844, %v845
  %v847 = vsub.f32 1.0, %v846
  %v848 = vmul.f32 %v845, %v847
  %v849 = vadd.f32 %v845, %v848
  %vm850 = vweird.f32 %v844
  %vm851 = vweird.f32 %v845
  %vm852 = vmor %vm850, %vm851
  %v853 = vsel %vm852, %v845, %v849
  %v854 = vand.u32 2147483647, %v844
  %vm855 = vcmp.eq.f32.partialorder %v854, 8.507059e+37
  %v856 = vand.u32 %v844, 2147483648
  %v857 = vor.u32 1.1754944e-38, %v856
  %v858 = vsel %vm855, %v857, %v853
  %v859 = vmul.f32 1.0, %v858
  %v860 = vtanh.pop %v840
  %v861 = vmul.f32 %v859, %v812
  %863 = vrot.lane.b32.xlu0 %v860, 64
  %v864 = vpop.permute.xlu0 %863
  %v866 = vmul.f32 %v859, %v864
  %868 = vrot.lane.b32.xlu0 %v866, 32
  %v869 = vpop.permute.xlu0 %868
  %v871 = vadd.f32 %v861, %v869
  %v872 = vtanh.pop %v871
  %874 = vrot.lane.b32.xlu0 %v872, 64
  %v875 = vpop.permute.xlu0 %874
  %v877 = vmul.f32 %v859, %v875
  %v878 = vld [vmem:[#allocation3 + $0x10] sm:$0xff]
  %v879 = vpack.c.bf16 %v877, %v877
  %881 = vrot.lane.b32.xlu0 %v879, 32
  %v882 = vpop.permute.xlu0 %881
  %v884 = vsel %vm137, %v882, 0
  %886 = vmatpush.bf16.msra.mxu0 0
  %887 = vmatpush.bf16.msra.mxu0 0
  %888 = vmatpush.bf16.msra.mxu0 0
  %889 = vmatpush.bf16.msra.mxu0 0
  %890 = vmatpush.bf16.msra.mxu0 0
  %891 = vmatpush.bf16.msra.mxu0 0
  %892 = vmatpush.bf16.msra.mxu0 %v765
  %893 = vmatpush.bf16.msra.mxu0 %v764
  %894 = vmatmul.bf16.gmra.mxu0 %v884
  %v895 = vpop.f32.mrf.mxu0
  %v896 = vadd.f32 0.0, %v895
  %v897 = vpop.f32.mrf.mxu0
  %898 = vdwg.mxu0
  %v899 = vadd.f32 %v878, %v896
  %v900 = vxor.u32 %v899, 2147483648
  %v901 = vmul.f32 %v900, 1.442695
  %v902 = vpow.pop %v901
  %v903 = vadd.f32 %v902, 1.0
  %v904 = vrcp.pop %v903
  %v905 = vmul.f32 %v903, %v904
  %v906 = vsub.f32 1.0, %v905
  %v907 = vmul.f32 %v904, %v906
  %v908 = vadd.f32 %v904, %v907
  %vm909 = vweird.f32 %v903
  %vm910 = vweird.f32 %v904
  %vm911 = vmor %vm909, %vm910
  %v912 = vsel %vm911, %v904, %v908
  %v913 = vand.u32 2147483647, %v903
  %vm914 = vcmp.eq.f32.partialorder %v913, 8.507059e+37
  %v915 = vand.u32 %v903, 2147483648
  %v916 = vor.u32 1.1754944e-38, %v915
  %v917 = vsel %vm914, %v916, %v912
  %v918 = vmul.f32 1.0, %v917
  %v919 = vtanh.pop %v899
  %v920 = vmul.f32 %v918, %v871
  %922 = vrot.lane.b32.xlu0 %v919, 64
  %v923 = vpop.permute.xlu0 %922
  %v925 = vmul.f32 %v918, %v923
  %927 = vrot.lane.b32.xlu0 %v925, 32
  %v928 = vpop.permute.xlu0 %927
  %v930 = vadd.f32 %v920, %v928
  %v931 = vtanh.pop %v930
  %933 = vrot.lane.b32.xlu0 %v931, 64
  %v934 = vpop.permute.xlu0 %933
  %v936 = vmul.f32 %v918, %v934
  %v937 = vld [vmem:[#allocation3 + $0x18] sm:$0xff]
  %v938 = vpack.c.bf16 %v936, %v936
  %940 = vrot.lane.b32.xlu0 %v938, 32
  %v941 = vpop.permute.xlu0 %940
  %v943 = vsel %vm137, %v941, 0
  %945 = vmatpush.bf16.msra.mxu0 0
  %946 = vmatpush.bf16.msra.mxu0 0
  %947 = vmatpush.bf16.msra.mxu0 0
  %948 = vmatpush.bf16.msra.mxu0 0
  %949 = vmatpush.bf16.msra.mxu0 0
  %950 = vmatpush.bf16.msra.mxu0 0
  %951 = vmatpush.bf16.msra.mxu0 %v765
  %952 = vmatpush.bf16.msra.mxu0 %v764
  %953 = vmatmul.bf16.gmra.mxu0 %v943
  %v954 = vpop.f32.mrf.mxu0
  %v955 = vadd.f32 0.0, %v954
  %v956 = vpop.f32.mrf.mxu0
  %957 = vdwg.mxu0
  %v958 = vadd.f32 %v937, %v955
  %v959 = vxor.u32 %v958, 2147483648
  %v960 = vmul.f32 %v959, 1.442695
  %v961 = vpow.pop %v960
  %v962 = vadd.f32 %v961, 1.0
  %v963 = vrcp.pop %v962
  %v964 = vmul.f32 %v962, %v963
  %v965 = vsub.f32 1.0, %v964
  %v966 = vmul.f32 %v963, %v965
  %v967 = vadd.f32 %v963, %v966
  %vm968 = vweird.f32 %v962
  %vm969 = vweird.f32 %v963
  %vm970 = vmor %vm968, %vm969
  %v971 = vsel %vm970, %v963, %v967
  %v972 = vand.u32 2147483647, %v962
  %vm973 = vcmp.eq.f32.partialorder %v972, 8.507059e+37
  %v974 = vand.u32 %v962, 2147483648
  %v975 = vor.u32 1.1754944e-38, %v974
  %v976 = vsel %vm973, %v975, %v971
  %v977 = vmul.f32 1.0, %v976
  %v978 = vtanh.pop %v958
  %v979 = vmul.f32 %v977, %v930
  %981 = vrot.lane.b32.xlu0 %v978, 64
  %v982 = vpop.permute.xlu0 %981
  %v984 = vmul.f32 %v977, %v982
  %986 = vrot.lane.b32.xlu0 %v984, 32
  %v987 = vpop.permute.xlu0 %986
  %v989 = vadd.f32 %v979, %v987
  %v990 = vtanh.pop %v989
  %992 = vrot.lane.b32.xlu0 %v990, 64
  %v993 = vpop.permute.xlu0 %992
  %v995 = vmul.f32 %v977, %v993
  %v996 = vld [vmem:[#allocation3 + $0x20] sm:$0xff]
  %v997 = vpack.c.bf16 %v995, %v995
  %999 = vrot.lane.b32.xlu0 %v997, 32
  %v1000 = vpop.permute.xlu0 %999
  %v1002 = vsel %vm137, %v1000, 0
  %1004 = vmatpush.bf16.msra.mxu0 0
  %1005 = vmatpush.bf16.msra.mxu0 0
  %1006 = vmatpush.bf16.msra.mxu0 0
  %1007 = vmatpush.bf16.msra.mxu0 0
  %1008 = vmatpush.bf16.msra.mxu0 0
  %1009 = vmatpush.bf16.msra.mxu0 0
  %1010 = vmatpush.bf16.msra.mxu0 %v765
  %1011 = vmatpush.bf16.msra.mxu0 %v764
  %1012 = vmatmul.bf16.gmra.mxu0 %v1002
  %v1013 = vpop.f32.mrf.mxu0
  %v1014 = vadd.f32 0.0, %v1013
  %v1015 = vpop.f32.mrf.mxu0
  %1016 = vdwg.mxu0
  %v1017 = vadd.f32 %v996, %v1014
  %v1018 = vxor.u32 %v1017, 2147483648
  %v1019 = vmul.f32 %v1018, 1.442695
  %v1020 = vpow.pop %v1019
  %v1021 = vadd.f32 %v1020, 1.0
  %v1022 = vrcp.pop %v1021
  %v1023 = vmul.f32 %v1021, %v1022
  %v1024 = vsub.f32 1.0, %v1023
  %v1025 = vmul.f32 %v1022, %v1024
  %v1026 = vadd.f32 %v1022, %v1025
  %vm1027 = vweird.f32 %v1021
  %vm1028 = vweird.f32 %v1022
  %vm1029 = vmor %vm1027, %vm1028
  %v1030 = vsel %vm1029, %v1022, %v1026
  %v1031 = vand.u32 2147483647, %v1021
  %vm1032 = vcmp.eq.f32.partialorder %v1031, 8.507059e+37
  %v1033 = vand.u32 %v1021, 2147483648
  %v1034 = vor.u32 1.1754944e-38, %v1033
  %v1035 = vsel %vm1032, %v1034, %v1030
  %v1036 = vmul.f32 1.0, %v1035
  %v1037 = vtanh.pop %v1017
  %v1038 = vmul.f32 %v1036, %v989
  %1040 = vrot.lane.b32.xlu0 %v1037, 64
  %v1041 = vpop.permute.xlu0 %1040
  %v1043 = vmul.f32 %v1036, %v1041
  %1045 = vrot.lane.b32.xlu0 %v1043, 32
  %v1046 = vpop.permute.xlu0 %1045
  %v1048 = vadd.f32 %v1038, %v1046
  %v1049 = vtanh.pop %v1048
  %1051 = vrot.lane.b32.xlu0 %v1049, 64
  %v1052 = vpop.permute.xlu0 %1051
  %v1054 = vmul.f32 %v1036, %v1052
  %v1055 = vld [vmem:[#allocation3 + $0x28] sm:$0xff]
  %v1056 = vpack.c.bf16 %v1054, %v1054
  %1058 = vrot.lane.b32.xlu0 %v1056, 32
  %v1059 = vpop.permute.xlu0 %1058
  %v1061 = vsel %vm137, %v1059, 0
  %1063 = vmatpush.bf16.msra.mxu0 0
  %1064 = vmatpush.bf16.msra.mxu0 0
  %1065 = vmatpush.bf16.msra.mxu0 0
  %1066 = vmatpush.bf16.msra.mxu0 0
  %1067 = vmatpush.bf16.msra.mxu0 0
  %1068 = vmatpush.bf16.msra.mxu0 0
  %1069 = vmatpush.bf16.msra.mxu0 %v765
  %1070 = vmatpush.bf16.msra.mxu0 %v764
  %1071 = vmatmul.bf16.gmra.mxu0 %v1061
  %v1072 = vpop.f32.mrf.mxu0
  %v1073 = vadd.f32 0.0, %v1072
  %v1074 = vpop.f32.mrf.mxu0
  %1075 = vdwg.mxu0
  %v1076 = vadd.f32 %v1055, %v1073
  %v1077 = vxor.u32 %v1076, 2147483648
  %v1078 = vmul.f32 %v1077, 1.442695
  %v1079 = vpow.pop %v1078
  %v1080 = vadd.f32 %v1079, 1.0
  %v1081 = vrcp.pop %v1080
  %v1082 = vmul.f32 %v1080, %v1081
  %v1083 = vsub.f32 1.0, %v1082
  %v1084 = vmul.f32 %v1081, %v1083
  %v1085 = vadd.f32 %v1081, %v1084
  %vm1086 = vweird.f32 %v1080
  %vm1087 = vweird.f32 %v1081
  %vm1088 = vmor %vm1086, %vm1087
  %v1089 = vsel %vm1088, %v1081, %v1085
  %v1090 = vand.u32 2147483647, %v1080
  %vm1091 = vcmp.eq.f32.partialorder %v1090, 8.507059e+37
  %v1092 = vand.u32 %v1080, 2147483648
  %v1093 = vor.u32 1.1754944e-38, %v1092
  %v1094 = vsel %vm1091, %v1093, %v1089
  %v1095 = vmul.f32 1.0, %v1094
  %v1096 = vtanh.pop %v1076
  %v1097 = vmul.f32 %v1095, %v1048
  %1099 = vrot.lane.b32.xlu0 %v1096, 64
  %v1100 = vpop.permute.xlu0 %1099
  %v1102 = vmul.f32 %v1095, %v1100
  %1104 = vrot.lane.b32.xlu0 %v1102, 32
  %v1105 = vpop.permute.xlu0 %1104
  %v1107 = vadd.f32 %v1097, %v1105
  %v1108 = vtanh.pop %v1107
  %1110 = vrot.lane.b32.xlu0 %v1108, 64
  %v1111 = vpop.permute.xlu0 %1110
  %v1113 = vmul.f32 %v1095, %v1111
  %v1114 = vld [vmem:[#allocation3 + $0x30] sm:$0xff]
  %v1115 = vpack.c.bf16 %v1113, %v1113
  %1117 = vrot.lane.b32.xlu0 %v1115, 32
  %v1118 = vpop.permute.xlu0 %1117
  %v1120 = vsel %vm137, %v1118, 0
  %1122 = vmatpush.bf16.msra.mxu0 0
  %1123 = vmatpush.bf16.msra.mxu0 0
  %1124 = vmatpush.bf16.msra.mxu0 0
  %1125 = vmatpush.bf16.msra.mxu0 0
  %1126 = vmatpush.bf16.msra.mxu0 0
  %1127 = vmatpush.bf16.msra.mxu0 0
  %1128 = vmatpush.bf16.msra.mxu0 %v765
  %1129 = vmatpush.bf16.msra.mxu0 %v764
  %1130 = vmatmul.bf16.gmra.mxu0 %v1120
  %v1131 = vpop.f32.mrf.mxu0
  %v1132 = vadd.f32 0.0, %v1131
  %v1133 = vpop.f32.mrf.mxu0
  %1134 = vdwg.mxu0
  %v1135 = vadd.f32 %v1114, %v1132
  %v1136 = vxor.u32 %v1135, 2147483648
  %v1137 = vmul.f32 %v1136, 1.442695
  %v1138 = vpow.pop %v1137
  %v1139 = vadd.f32 %v1138, 1.0
  %v1140 = vrcp.pop %v1139
  %v1141 = vmul.f32 %v1139, %v1140
  %v1142 = vsub.f32 1.0, %v1141
  %v1143 = vmul.f32 %v1140, %v1142
  %v1144 = vadd.f32 %v1140, %v1143
  %vm1145 = vweird.f32 %v1139
  %vm1146 = vweird.f32 %v1140
  %vm1147 = vmor %vm1145, %vm1146
  %v1148 = vsel %vm1147, %v1140, %v1144
  %v1149 = vand.u32 2147483647, %v1139
  %vm1150 = vcmp.eq.f32.partialorder %v1149, 8.507059e+37
  %v1151 = vand.u32 %v1139, 2147483648
  %v1152 = vor.u32 1.1754944e-38, %v1151
  %v1153 = vsel %vm1150, %v1152, %v1148
  %v1154 = vmul.f32 1.0, %v1153
  %v1155 = vtanh.pop %v1135
  %v1156 = vmul.f32 %v1154, %v1107
  %1158 = vrot.lane.b32.xlu0 %v1155, 64
  %v1159 = vpop.permute.xlu0 %1158
  %v1161 = vmul.f32 %v1154, %v1159
  %1163 = vrot.lane.b32.xlu0 %v1161, 32
  %v1164 = vpop.permute.xlu0 %1163
  %v1166 = vadd.f32 %v1156, %v1164
  %v1167 = vtanh.pop %v1166
  %1169 = vrot.lane.b32.xlu0 %v1167, 64
  %v1170 = vpop.permute.xlu0 %1169
  %v1172 = vmul.f32 %v1154, %v1170
  %v1173 = vld [vmem:[#allocation3 + $0x38] sm:$0xff]
  %v1174 = vpack.c.bf16 %v1172, %v1172
  %1176 = vrot.lane.b32.xlu0 %v1174, 32
  %v1177 = vpop.permute.xlu0 %1176
  %v1179 = vsel %vm137, %v1177, 0
  %1181 = vmatpush.bf16.msra.mxu0 0
  %1182 = vmatpush.bf16.msra.mxu0 0
  %1183 = vmatpush.bf16.msra.mxu0 0
  %1184 = vmatpush.bf16.msra.mxu0 0
  %1185 = vmatpush.bf16.msra.mxu0 0
  %1186 = vmatpush.bf16.msra.mxu0 0
  %1187 = vmatpush.bf16.msra.mxu0 %v765
  %1188 = vmatpush.bf16.msra.mxu0 %v764
  %1189 = vmatmul.bf16.gmra.mxu0 %v1179
  %v1190 = vpop.f32.mrf.mxu0
  %v1191 = vadd.f32 0.0, %v1190
  %v1192 = vpop.f32.mrf.mxu0
  %1193 = vdwg.mxu0
  %v1194 = vadd.f32 %v1173, %v1191
  %v1195 = vxor.u32 %v1194, 2147483648
  %v1196 = vmul.f32 %v1195, 1.442695
  %v1197 = vpow.pop %v1196
  %v1198 = vadd.f32 %v1197, 1.0
  %v1199 = vrcp.pop %v1198
  %v1200 = vmul.f32 %v1198, %v1199
  %v1201 = vsub.f32 1.0, %v1200
  %v1202 = vmul.f32 %v1199, %v1201
  %v1203 = vadd.f32 %v1199, %v1202
  %vm1204 = vweird.f32 %v1198
  %vm1205 = vweird.f32 %v1199
  %vm1206 = vmor %vm1204, %vm1205
  %v1207 = vsel %vm1206, %v1199, %v1203
  %v1208 = vand.u32 2147483647, %v1198
  %vm1209 = vcmp.eq.f32.partialorder %v1208, 8.507059e+37
  %v1210 = vand.u32 %v1198, 2147483648
  %v1211 = vor.u32 1.1754944e-38, %v1210
  %v1212 = vsel %vm1209, %v1211, %v1207
  %v1213 = vmul.f32 1.0, %v1212
  %v1214 = vtanh.pop %v1194
  %v1215 = vmul.f32 %v1213, %v1166
  %1217 = vrot.lane.b32.xlu0 %v1214, 64
  %v1218 = vpop.permute.xlu0 %1217
  %v1220 = vmul.f32 %v1213, %v1218
  %1222 = vrot.lane.b32.xlu0 %v1220, 32
  %v1223 = vpop.permute.xlu0 %1222
  %v1225 = vadd.f32 %v1215, %v1223
  %v1226 = vtanh.pop %v1225
  %1228 = vrot.lane.b32.xlu0 %v1226, 64
  %v1229 = vpop.permute.xlu0 %1228
  %v1231 = vmul.f32 %v1213, %v1229
  %v1232 = vld [vmem:[%s7] sm:$0xff]
  %v1233 = vld [vmem:[%s7 + $0x8] sm:$0xff]
  %v1234 = vld [vmem:[%s7 + $0x10] sm:$0xff]
  %v1235 = vld [vmem:[%s7 + $0x18] sm:$0xff]
  %v1236 = vld [vmem:[%s8] sm:$0x1]
  %v1238 = vperm.slane %v1236, 0
  %1241 = vrot.lane.b32.xlu0 %v1231, 32
  %v1242 = vpop.permute.xlu0 %1241
  %v1243 = vsel %vm137, %v1242, 0
  %1245 = vmatpush.msra.mxu0 0.0
  %1246 = vmatpush.msra.mxu0 0.0
  %1247 = vmatpush.msra.mxu0 0.0
  %1248 = vmatpush.msra.mxu0 0.0
  %1249 = vmatpush.msra.mxu0 0.0
  %1250 = vmatpush.msra.mxu0 0.0
  %1251 = vmatpush.msra.mxu0 0.0
  %1252 = vmatpush.msra.mxu0 0.0
  %1253 = vmatpush.msra.mxu0 0.0
  %1254 = vmatpush.msra.mxu0 0.0
  %1255 = vmatpush.msra.mxu0 0.0
  %1256 = vmatpush.msra.mxu0 0.0
  %1257 = vmatpush.msra.mxu0 %v1235
  %1258 = vmatpush.msra.mxu0 %v1234
  %1259 = vmatpush.msra.mxu0 %v1233
  %1260 = vmatpush.msra.mxu0 %v1232
  %1261 = vmatmul.f32.gmra.mxu0 %v1243
  %v1262 = vpop.f32.mrf.mxu0
  %v1263 = vadd.f32 %v1238, %v1262
  %1264 = vdwg.mxu0
  %vm1265 = vcmask 31744
  %1266 = vst.msk [vmem:[%s9] sm:$0xff] %vm1265, %v1263
  // Predicated region
  $region38: #{lstm_predictor_forward.1} parent=0 // pred_check
    _
  $region39: #{lstm_predictor_forward.1} parent=0 // pred_check_branch
    %1268 = sbr.rel (0) target = $region41
  $region40: #{lstm_predictor_forward.1} parent=0 // pred_region
    _
  $region41: #{lstm_predictor_forward.1} parent=0 // pred_fallthru
    _
  // Predicated region
  $region42: #{lstm_predictor_forward.1} parent=0 // pred_check
    _
  $region43: #{lstm_predictor_forward.1} parent=0 // pred_check_branch
    %1270 = sbr.rel (0) target = $region45
  $region44: #{lstm_predictor_forward.1} parent=0 // pred_region
    _
  $region45: #{lstm_predictor_forward.1} parent=0 // pred_fallthru
    _

</llo_original>
